<compile_context>
chip_gen: v7x
topology: tpu7x:2x2x1
jax: 0.10.0
libtpu: 0.0.40
codegen_flags: <defaults>
</compile_context>

<pallas_src>
import math
from functools import partial

import jax
import jax.numpy as jnp
from jax.experimental import pallas as pl
from jax.experimental.pallas import tpu as pltpu

# ----------------------------- config (small) -----------------------------
CFG = dict(
    vocab_size=256,
    context_length=16,
    emb_dim=32,
    n_heads=4,
    n_layers=2,
    drop_rate=0.0,   # identity dropout
    qkv_bias=False,
)
EPS = 1e-5


# ----------------------------- math helpers -----------------------------
def _layernorm(x, scale, shift):
    # x: (S, E), scale/shift: (1, E) -- matches torch var(unbiased=False)
    mean = jnp.mean(x, axis=-1, keepdims=True)
    var = jnp.mean((x - mean) ** 2, axis=-1, keepdims=True)
    norm = (x - mean) / jnp.sqrt(var + EPS)
    return scale * norm + shift


def _gelu(x):
    # tanh-approximation GELU, matching the reference module
    c = math.sqrt(2.0 / math.pi)
    return 0.5 * x * (1.0 + jnp.tanh(c * (x + 0.044715 * x * x * x)))


# ------------------------- fused GPT forward kernel -------------------------
def gpt_kernel(
    x_ref, mask_ref,
    ln1_s_ref, ln1_b_ref,
    wqkv_ref, wo_ref, bo_ref,
    ln2_s_ref, ln2_b_ref,
    w1_ref, b1_ref, w2_ref, b2_ref,
    fin_s_ref, fin_b_ref, wout_ref,
    o_ref,
    x_vmem,
    *, num_heads,
):
    l = pl.program_id(1)
    n_layers = pl.num_programs(1)

    # Load the embedding activations into the resident VMEM slab at layer 0.
    @pl.when(l == 0)
    def _():
        x_vmem[...] = x_ref[0]

    x = x_vmem[...]                     # (S, E)
    S, E = x.shape
    head_dim = E // num_heads
    inv_sqrt_d = 1.0 / math.sqrt(head_dim)
    bias = mask_ref[...]                # (1, S, S) additive causal bias (0 / -inf)

    # ---- attention sub-block ----
    h = _layernorm(x, ln1_s_ref[0], ln1_b_ref[0])                      # (S, E)
    qkv = jnp.dot(h, wqkv_ref[0], preferred_element_type=jnp.float32)  # (S, 3E)
    q = qkv[:, :E] * inv_sqrt_d        # fold 1/sqrt(d) into q (equivalent)
    k = qkv[:, E:2 * E]
    v = qkv[:, 2 * E:]

    # head-batched layout (H, S, Dh) built from lane slices
    def split_heads(t):
        return jnp.concatenate(
            [t[:, hd * head_dim:(hd + 1) * head_dim][jnp.newaxis]
             for hd in range(num_heads)],
            axis=0,
        )

    qh = split_heads(q)
    kh = split_heads(k)
    vh = split_heads(v)

    # batched matmul over heads; k-transpose folded into the contraction
    scores = jnp.einsum('hqd,hkd->hqk', qh, kh,
                        preferred_element_type=jnp.float32) + bias       # (H,S,S)
    m = jnp.max(scores, axis=-1, keepdims=True)
    e = jnp.exp(scores - m)
    denom = jnp.sum(e, axis=-1, keepdims=True)
    w = e * pl.reciprocal(denom, approx=True)                            # softmax
    ctx = jnp.einsum('hqk,hkd->hqd', w, vh,
                     preferred_element_type=jnp.float32)                 # (H,S,Dh)
    ctx = jnp.concatenate([ctx[hd] for hd in range(num_heads)], axis=-1)  # (S, E)

    attn_out = jnp.dot(ctx, wo_ref[0],
                       preferred_element_type=jnp.float32) + bo_ref[0]
    x = x + attn_out                                                     # residual

    # ---- feed-forward sub-block ----
    h2 = _layernorm(x, ln2_s_ref[0], ln2_b_ref[0])
    ff = jnp.dot(h2, w1_ref[0], preferred_element_type=jnp.float32) + b1_ref[0]
    ff = _gelu(ff)
    ff = jnp.dot(ff, w2_ref[0], preferred_element_type=jnp.float32) + b2_ref[0]
    x = x + ff                                                           # residual

    x_vmem[...] = x

    # final LayerNorm + LM head, only after the last layer; only these
    # lane-dense (S, V) logits ever hit HBM.
    @pl.when(l == n_layers - 1)
    def _():
        hf = _layernorm(x, fin_s_ref[...], fin_b_ref[...])
        o_ref[0] = jnp.dot(hf, wout_ref[...], preferred_element_type=jnp.float32)


def gpt_pallas(params, x_emb, mask_bias, cfg):
    B, S, E = x_emb.shape
    V = cfg["vocab_size"]
    L = cfg["n_layers"]
    H = 4 * E

    def const_spec(shape):
        return pl.BlockSpec(shape, lambda b, l, _s=shape: (0,) * len(_s))

    def layer_spec(shape):
        return pl.BlockSpec((1,) + shape,
                            lambda b, l, _s=shape: (l,) + (0,) * len(_s))

    return pl.pallas_call(
        partial(gpt_kernel, num_heads=cfg["n_heads"]),
        out_shape=jax.ShapeDtypeStruct((B, S, V), jnp.float32),
        grid=(B, L),
        in_specs=[
            pl.BlockSpec((1, S, E), lambda b, l: (b, 0, 0)),   # x (embeddings)
            const_spec((1, S, S)),                             # causal bias
            layer_spec((1, E)), layer_spec((1, E)),            # ln1 scale/shift
            layer_spec((E, 3 * E)),                            # Wqkv (fused)
            layer_spec((E, E)), layer_spec((1, E)),            # Wo, bo
            layer_spec((1, E)), layer_spec((1, E)),            # ln2 scale/shift
            layer_spec((E, H)), layer_spec((1, H)),            # W1, b1
            layer_spec((H, E)), layer_spec((1, E)),            # W2, b2
            const_spec((1, E)), const_spec((1, E)),            # final LN scale/shift
            const_spec((E, V)),                                # out_head
        ],
        out_specs=pl.BlockSpec((1, S, V), lambda b, l: (b, 0, 0)),
        scratch_shapes=[pltpu.VMEM((S, E), jnp.float32)],
        compiler_params=pltpu.CompilerParams(
            dimension_semantics=("parallel", "arbitrary")),
    )(
        x_emb, mask_bias,
        params["ln1_s"], params["ln1_b"],
        params["wqkv"], params["wo"], params["bo"],
        params["ln2_s"], params["ln2_b"],
        params["w1"], params["b1"], params["w2"], params["b2"],
        params["final_ln_s"], params["final_ln_b"], params["out_head"],
    )


# ----------------------------- full forward -----------------------------
def gpt_forward(params, in_idx, cfg):
    B, S = in_idx.shape
    # embedding lookups (glue, plain JAX gather)
    tok = jnp.take(params["tok_emb"], in_idx, axis=0)             # (B, S, E)
    pos = params["pos_emb"][:S]                                   # (S, E)
    x = (tok + pos[None, :, :]).astype(jnp.float32)
    # drop_emb: drop_rate = 0.0 -> identity

    # causal additive bias: -inf strictly above the diagonal (triu, diag=1)
    row = jnp.arange(S)[:, None]
    col = jnp.arange(S)[None, :]
    mask_bias = jnp.where(col > row, -jnp.inf, 0.0).astype(jnp.float32)[None]

    return gpt_pallas(params, x, mask_bias, cfg)


# ----------------------------- reference (plain JAX) -----------------------------
def gpt_forward_ref(params, in_idx, cfg):
    E = cfg["emb_dim"]
    nH = cfg["n_heads"]
    Dh = E // nH
    B, S = in_idx.shape

    def ln(x, s, b):
        m = x.mean(-1, keepdims=True)
        v = ((x - m) ** 2).mean(-1, keepdims=True)
        return s * (x - m) / jnp.sqrt(v + EPS) + b

    x = jnp.take(params["tok_emb"], in_idx, axis=0) + params["pos_emb"][:S][None]
    mask = jnp.triu(jnp.ones((S, S), bool), k=1)
    for l in range(cfg["n_layers"]):
        h = ln(x, params["ln1_s"][l], params["ln1_b"][l])
        qkv = h @ params["wqkv"][l]
        q, k, v = jnp.split(qkv, 3, axis=-1)
        rs = lambda t: t.reshape(B, S, nH, Dh).transpose(0, 2, 1, 3)
        qh, kh, vh = rs(q), rs(k), rs(v)
        scores = qh @ kh.transpose(0, 1, 3, 2)
        scores = jnp.where(mask, -jnp.inf, scores)
        w = jax.nn.softmax(scores / math.sqrt(Dh), axis=-1)
        ctx = (w @ vh).transpose(0, 2, 1, 3).reshape(B, S, E)
        x = x + ctx @ params["wo"][l] + params["bo"][l]
        h2 = ln(x, params["ln2_s"][l], params["ln2_b"][l])
        ff = _gelu(h2 @ params["w1"][l] + params["b1"][l])
        x = x + ff @ params["w2"][l] + params["b2"][l]
    x = ln(x, params["final_ln_s"], params["final_ln_b"])
    return x @ params["out_head"]


# ----------------------------- parameter init -----------------------------
def init_params(key, cfg):
    E = cfg["emb_dim"]
    V = cfg["vocab_size"]
    C = cfg["context_length"]
    H = 4 * E
    L = cfg["n_layers"]

    keys = iter(jax.random.split(key, 3 + 6 * L))
    nrm = lambda k, shape: (0.02 * jax.random.normal(k, shape)).astype(jnp.float32)

    wqkv, wo, w1, w2 = [], [], [], []
    for _ in range(L):
        wq = nrm(next(keys), (E, E))
        wk = nrm(next(keys), (E, E))
        wv = nrm(next(keys), (E, E))
        wqkv.append(jnp.concatenate([wq, wk, wv], axis=1))   # (E, 3E)
        wo.append(nrm(next(keys), (E, E)))
        w1.append(nrm(next(keys), (E, H)))
        w2.append(nrm(next(keys), (H, E)))

    params = dict(
        tok_emb=nrm(next(keys), (V, E)),
        pos_emb=nrm(next(keys), (C, E)),
        out_head=nrm(next(keys), (E, V)),
        final_ln_s=jnp.ones((1, E), jnp.float32),
        final_ln_b=jnp.zeros((1, E), jnp.float32),
        # stacked per-layer parameters (leading layer axis)
        ln1_s=jnp.ones((L, 1, E), jnp.float32),
        ln1_b=jnp.zeros((L, 1, E), jnp.float32),
        ln2_s=jnp.ones((L, 1, E), jnp.float32),
        ln2_b=jnp.zeros((L, 1, E), jnp.float32),
        wqkv=jnp.stack(wqkv, axis=0),                        # (L, E, 3E)
        wo=jnp.stack(wo, axis=0),                            # (L, E, E)
        bo=jnp.zeros((L, 1, E), jnp.float32),
        w1=jnp.stack(w1, axis=0),                            # (L, E, 4E)
        b1=jnp.zeros((L, 1, H), jnp.float32),
        w2=jnp.stack(w2, axis=0),                            # (L, 4E, E)
        b2=jnp.zeros((L, 1, E), jnp.float32),
    )
    return params


# ----------------------------- main -----------------------------
if __name__ == "__main__":
    key = jax.random.PRNGKey(0)
    pkey, dkey = jax.random.split(key)

    params = init_params(pkey, CFG)

    B, S = 2, 8
    in_idx = jax.random.randint(dkey, (B, S), 0, CFG["vocab_size"], dtype=jnp.int32)

    logits = gpt_forward(params, in_idx, CFG)
    logits = jax.block_until_ready(logits)

    assert logits.shape == (B, S, CFG["vocab_size"]), logits.shape
    assert bool(jnp.all(jnp.isfinite(logits)))

    # correctness check against a pure-JAX reference of the same forward
    ref = jax.block_until_ready(gpt_forward_ref(params, in_idx, CFG))
    assert bool(jnp.allclose(logits, ref, atol=2e-2, rtol=2e-2)), float(
        jnp.max(jnp.abs(logits - ref)))

    print("KERNEL_OK")
</pallas_src>

<mosaic_0001>
module attributes {stable_mosaic.version = 11 : i64} {
  func.func @gpt_kernel(%arg0: i32, %arg1: i32, %arg2: memref<1x8x32xf32, #tpu.memory_space<vmem>>, %arg3: memref<1x8x8xf32, #tpu.memory_space<vmem>>, %arg4: memref<1x1x32xf32, #tpu.memory_space<vmem>>, %arg5: memref<1x1x32xf32, #tpu.memory_space<vmem>>, %arg6: memref<1x32x96xf32, #tpu.memory_space<vmem>>, %arg7: memref<1x32x32xf32, #tpu.memory_space<vmem>>, %arg8: memref<1x1x32xf32, #tpu.memory_space<vmem>>, %arg9: memref<1x1x32xf32, #tpu.memory_space<vmem>>, %arg10: memref<1x1x32xf32, #tpu.memory_space<vmem>>, %arg11: memref<1x32x128xf32, #tpu.memory_space<vmem>>, %arg12: memref<1x1x128xf32, #tpu.memory_space<vmem>>, %arg13: memref<1x128x32xf32, #tpu.memory_space<vmem>>, %arg14: memref<1x1x32xf32, #tpu.memory_space<vmem>>, %arg15: memref<1x32xf32, #tpu.memory_space<vmem>>, %arg16: memref<1x32xf32, #tpu.memory_space<vmem>>, %arg17: memref<32x256xf32, #tpu.memory_space<vmem>>, %arg18: memref<1x8x256xf32, #tpu.memory_space<vmem>>, %arg19: memref<8x32xf32, #tpu.memory_space<vmem>>) attributes {dimension_semantics = [#tpu.dimension_semantics<parallel>, #tpu.dimension_semantics<arbitrary>], iteration_bounds = array<i64: 2, 2>, scalar_prefetch = 0 : i64, scratch_operands = 1 : i64, tpu.core_type = #tpu.core_type<tc>, window_params = [{transform_indices = @transform_0, window_bounds = array<i64: 1, 8, 32>}, {pipeline_mode = #tpu.pipeline_mode<synchronous>, transform_indices = @transform_1, window_bounds = array<i64: 1, 8, 8>}, {transform_indices = @transform_2, window_bounds = array<i64: 1, 1, 32>}, {transform_indices = @transform_3, window_bounds = array<i64: 1, 1, 32>}, {transform_indices = @transform_4, window_bounds = array<i64: 1, 32, 96>}, {transform_indices = @transform_5, window_bounds = array<i64: 1, 32, 32>}, {transform_indices = @transform_6, window_bounds = array<i64: 1, 1, 32>}, {transform_indices = @transform_7, window_bounds = array<i64: 1, 1, 32>}, {transform_indices = @transform_8, window_bounds = array<i64: 1, 1, 32>}, {transform_indices = @transform_9, window_bounds = array<i64: 1, 32, 128>}, {transform_indices = @transform_10, window_bounds = array<i64: 1, 1, 128>}, {transform_indices = @transform_11, window_bounds = array<i64: 1, 128, 32>}, {transform_indices = @transform_12, window_bounds = array<i64: 1, 1, 32>}, {pipeline_mode = #tpu.pipeline_mode<synchronous>, transform_indices = @transform_13, window_bounds = array<i64: 1, 32>}, {pipeline_mode = #tpu.pipeline_mode<synchronous>, transform_indices = @transform_14, window_bounds = array<i64: 1, 32>}, {pipeline_mode = #tpu.pipeline_mode<synchronous>, transform_indices = @transform_15, window_bounds = array<i64: 32, 256>}, {transform_indices = @transform_16, window_bounds = array<i64: 1, 8, 256>}]} {
    %c0_i32 = arith.constant 0 : i32
    %0 = arith.cmpi eq, %arg1, %c0_i32 : i32
    %1 = arith.extui %0 : i1 to i32
    %c0_i32_0 = arith.constant 0 : i32
    %2 = arith.cmpi ne, %1, %c0_i32_0 : i32
    scf.if %2 {
      %c0_63 = arith.constant 0 : index
      %c0_64 = arith.constant 0 : index
      %c0_65 = arith.constant 0 : index
      %155 = vector.load %arg2[%c0_63, %c0_64, %c0_65] : memref<1x8x32xf32, #tpu.memory_space<vmem>>, vector<1x8x32xf32>
      %156 = vector.shape_cast %155 : vector<1x8x32xf32> to vector<8x32xf32>
      %c0_66 = arith.constant 0 : index
      %c0_67 = arith.constant 0 : index
      %157 = vector.load %arg19[%c0_66, %c0_67] : memref<8x32xf32, #tpu.memory_space<vmem>>, vector<8x32xf32>
      tpu.vector_store %arg19[%c0_66, %c0_67], %156 {strides = array<i32>} : memref<8x32xf32, #tpu.memory_space<vmem>>, vector<8x32xf32>,
    } else {
    }
    %c0 = arith.constant 0 : index
    %c0_1 = arith.constant 0 : index
    %3 = vector.load %arg19[%c0, %c0_1] : memref<8x32xf32, #tpu.memory_space<vmem>>, vector<8x32xf32>
    %c0_2 = arith.constant 0 : index
    %c0_3 = arith.constant 0 : index
    %c0_4 = arith.constant 0 : index
    %4 = vector.load %arg3[%c0_2, %c0_3, %c0_4] : memref<1x8x8xf32, #tpu.memory_space<vmem>>, vector<1x8x8xf32>
    %c0_5 = arith.constant 0 : index
    %c0_6 = arith.constant 0 : index
    %c0_7 = arith.constant 0 : index
    %5 = vector.load %arg4[%c0_5, %c0_6, %c0_7] : memref<1x1x32xf32, #tpu.memory_space<vmem>>, vector<1x1x32xf32>
    %6 = vector.shape_cast %5 : vector<1x1x32xf32> to vector<1x32xf32>
    %c0_8 = arith.constant 0 : index
    %c0_9 = arith.constant 0 : index
    %c0_10 = arith.constant 0 : index
    %7 = vector.load %arg5[%c0_8, %c0_9, %c0_10] : memref<1x1x32xf32, #tpu.memory_space<vmem>>, vector<1x1x32xf32>
    %8 = vector.shape_cast %7 : vector<1x1x32xf32> to vector<1x32xf32>
    %cst = arith.constant dense<0.000000e+00> : vector<8xf32>
    %9 = vector.multi_reduction <add>, %3, %cst [1] : vector<8x32xf32> to vector<8xf32>
    %10 = vector.shape_cast %9 : vector<8xf32> to vector<8x1xf32>
    %cst_11 = arith.constant 3.200000e+01 : f32
    %11 = vector.broadcast %cst_11 : f32 to vector<8x1xf32>
    %12 = arith.divf %10, %11 : vector<8x1xf32>
    %13 = vector.broadcast %12 : vector<8x1xf32> to vector<8x32xf32>
    %14 = arith.subf %3, %13 : vector<8x32xf32>
    %15 = arith.mulf %14, %14 : vector<8x32xf32>
    %cst_12 = arith.constant dense<0.000000e+00> : vector<8xf32>
    %16 = vector.multi_reduction <add>, %15, %cst_12 [1] : vector<8x32xf32> to vector<8xf32>
    %17 = vector.shape_cast %16 : vector<8xf32> to vector<8x1xf32>
    %cst_13 = arith.constant 3.200000e+01 : f32
    %18 = vector.broadcast %cst_13 : f32 to vector<8x1xf32>
    %19 = arith.divf %17, %18 : vector<8x1xf32>
    %20 = vector.broadcast %12 : vector<8x1xf32> to vector<8x32xf32>
    %21 = arith.subf %3, %20 : vector<8x32xf32>
    %cst_14 = arith.constant 9.99999974E-6 : f32
    %22 = vector.broadcast %cst_14 : f32 to vector<8x1xf32>
    %23 = arith.addf %19, %22 : vector<8x1xf32>
    %24 = math.sqrt %23 : vector<8x1xf32>
    %25 = vector.broadcast %24 : vector<8x1xf32> to vector<8x32xf32>
    %26 = arith.divf %21, %25 : vector<8x32xf32>
    %27 = vector.broadcast %6 : vector<1x32xf32> to vector<8x32xf32>
    %28 = arith.mulf %27, %26 : vector<8x32xf32>
    %29 = vector.broadcast %8 : vector<1x32xf32> to vector<8x32xf32>
    %30 = arith.addf %28, %29 : vector<8x32xf32>
    %c0_15 = arith.constant 0 : index
    %c0_16 = arith.constant 0 : index
    %c0_17 = arith.constant 0 : index
    %31 = vector.load %arg6[%c0_15, %c0_16, %c0_17] : memref<1x32x96xf32, #tpu.memory_space<vmem>>, vector<1x32x96xf32>
    %32 = vector.shape_cast %31 : vector<1x32x96xf32> to vector<32x96xf32>
    %cst_18 = arith.constant dense<0.000000e+00> : vector<8x96xf32>
    %33 = tpu.matmul %30, %32, %cst_18 {dimension_numbers = #tpu.dot_dimension_numbers<[1], [0], [0], [1], [0, 0, 1, 1], [], []>} : vector<8x32xf32>, vector<32x96xf32>, vector<8x96xf32> -> vector<8x96xf32>
    %34 = vector.extract_strided_slice %33 {offsets = [0, 0], sizes = [8, 32], strides = [1, 1]} : vector<8x96xf32> to vector<8x32xf32>
    %cst_19 = arith.constant 0.353553385 : f32
    %35 = vector.broadcast %cst_19 : f32 to vector<8x32xf32>
    %36 = arith.mulf %34, %35 : vector<8x32xf32>
    %37 = vector.extract_strided_slice %33 {offsets = [0, 32], sizes = [8, 32], strides = [1, 1]} : vector<8x96xf32> to vector<8x32xf32>
    %38 = vector.extract_strided_slice %33 {offsets = [0, 64], sizes = [8, 32], strides = [1, 1]} : vector<8x96xf32> to vector<8x32xf32>
    %39 = vector.extract_strided_slice %36 {offsets = [0, 0], sizes = [8, 8], strides = [1, 1]} : vector<8x32xf32> to vector<8x8xf32>
    %40 = vector.shape_cast %39 : vector<8x8xf32> to vector<1x8x8xf32>
    %41 = vector.extract_strided_slice %36 {offsets = [0, 8], sizes = [8, 8], strides = [1, 1]} : vector<8x32xf32> to vector<8x8xf32>
    %42 = vector.shape_cast %41 : vector<8x8xf32> to vector<1x8x8xf32>
    %43 = vector.extract_strided_slice %36 {offsets = [0, 16], sizes = [8, 8], strides = [1, 1]} : vector<8x32xf32> to vector<8x8xf32>
    %44 = vector.shape_cast %43 : vector<8x8xf32> to vector<1x8x8xf32>
    %45 = vector.extract_strided_slice %36 {offsets = [0, 24], sizes = [8, 8], strides = [1, 1]} : vector<8x32xf32> to vector<8x8xf32>
    %46 = vector.shape_cast %45 : vector<8x8xf32> to vector<1x8x8xf32>
    %47 = tpu.concatenate %40, %42, %44, %46 in 0 : vector<1x8x8xf32>, vector<1x8x8xf32>, vector<1x8x8xf32>, vector<1x8x8xf32> -> vector<4x8x8xf32>
    %48 = vector.extract_strided_slice %37 {offsets = [0, 0], sizes = [8, 8], strides = [1, 1]} : vector<8x32xf32> to vector<8x8xf32>
    %49 = vector.shape_cast %48 : vector<8x8xf32> to vector<1x8x8xf32>
    %50 = vector.extract_strided_slice %37 {offsets = [0, 8], sizes = [8, 8], strides = [1, 1]} : vector<8x32xf32> to vector<8x8xf32>
    %51 = vector.shape_cast %50 : vector<8x8xf32> to vector<1x8x8xf32>
    %52 = vector.extract_strided_slice %37 {offsets = [0, 16], sizes = [8, 8], strides = [1, 1]} : vector<8x32xf32> to vector<8x8xf32>
    %53 = vector.shape_cast %52 : vector<8x8xf32> to vector<1x8x8xf32>
    %54 = vector.extract_strided_slice %37 {offsets = [0, 24], sizes = [8, 8], strides = [1, 1]} : vector<8x32xf32> to vector<8x8xf32>
    %55 = vector.shape_cast %54 : vector<8x8xf32> to vector<1x8x8xf32>
    %56 = tpu.concatenate %49, %51, %53, %55 in 0 : vector<1x8x8xf32>, vector<1x8x8xf32>, vector<1x8x8xf32>, vector<1x8x8xf32> -> vector<4x8x8xf32>
    %57 = vector.extract_strided_slice %38 {offsets = [0, 0], sizes = [8, 8], strides = [1, 1]} : vector<8x32xf32> to vector<8x8xf32>
    %58 = vector.shape_cast %57 : vector<8x8xf32> to vector<1x8x8xf32>
    %59 = vector.extract_strided_slice %38 {offsets = [0, 8], sizes = [8, 8], strides = [1, 1]} : vector<8x32xf32> to vector<8x8xf32>
    %60 = vector.shape_cast %59 : vector<8x8xf32> to vector<1x8x8xf32>
    %61 = vector.extract_strided_slice %38 {offsets = [0, 16], sizes = [8, 8], strides = [1, 1]} : vector<8x32xf32> to vector<8x8xf32>
    %62 = vector.shape_cast %61 : vector<8x8xf32> to vector<1x8x8xf32>
    %63 = vector.extract_strided_slice %38 {offsets = [0, 24], sizes = [8, 8], strides = [1, 1]} : vector<8x32xf32> to vector<8x8xf32>
    %64 = vector.shape_cast %63 : vector<8x8xf32> to vector<1x8x8xf32>
    %65 = tpu.concatenate %58, %60, %62, %64 in 0 : vector<1x8x8xf32>, vector<1x8x8xf32>, vector<1x8x8xf32>, vector<1x8x8xf32> -> vector<4x8x8xf32>
    "tpu.trace_start"() <{level = 10 : i32, message = "hqd,hkd->hqk"}> : () -> ()
    %cst_20 = arith.constant dense<0.000000e+00> : vector<4x8x8xf32>
    %66 = tpu.matmul %47, %56, %cst_20 {dimension_numbers = #tpu.dot_dimension_numbers<[2], [2], [1], [1], [0, 0, 0, 1, 1, 1], [0], [0]>} : vector<4x8x8xf32>, vector<4x8x8xf32>, vector<4x8x8xf32> -> vector<4x8x8xf32>
    "tpu.trace_stop"() : () -> ()
    %67 = vector.broadcast %4 : vector<1x8x8xf32> to vector<4x8x8xf32>
    %68 = arith.addf %66, %67 : vector<4x8x8xf32>
    %cst_21 = arith.constant dense<0xFF800000> : vector<4x8xf32>
    %69 = vector.multi_reduction <maximumf>, %68, %cst_21 [2] : vector<4x8x8xf32> to vector<4x8xf32>
    %70 = vector.shape_cast %69 : vector<4x8xf32> to vector<4x8x1xf32>
    %71 = vector.broadcast %70 : vector<4x8x1xf32> to vector<4x8x8xf32>
    %72 = arith.subf %68, %71 : vector<4x8x8xf32>
    %73 = math.exp %72 : vector<4x8x8xf32>
    %cst_22 = arith.constant dense<0.000000e+00> : vector<4x8xf32>
    %74 = vector.multi_reduction <add>, %73, %cst_22 [2] : vector<4x8x8xf32> to vector<4x8xf32>
    %75 = vector.shape_cast %74 : vector<4x8xf32> to vector<4x8x1xf32>
    %76 = tpu.reciprocal %75 {approx = true} : vector<4x8x1xf32> -> vector<4x8x1xf32>
    %77 = vector.broadcast %76 : vector<4x8x1xf32> to vector<4x8x8xf32>
    %78 = arith.mulf %73, %77 : vector<4x8x8xf32>
    "tpu.trace_start"() <{level = 10 : i32, message = "hqk,hkd->hqd"}> : () -> ()
    %cst_23 = arith.constant dense<0.000000e+00> : vector<4x8x8xf32>
    %79 = tpu.matmul %78, %65, %cst_23 {dimension_numbers = #tpu.dot_dimension_numbers<[2], [1], [1], [2], [0, 0, 0, 1, 1, 2], [0], [0]>} : vector<4x8x8xf32>, vector<4x8x8xf32>, vector<4x8x8xf32> -> vector<4x8x8xf32>
    "tpu.trace_stop"() : () -> ()
    %80 = vector.extract_strided_slice %79 {offsets = [0, 0, 0], sizes = [1, 8, 8], strides = [1, 1, 1]} : vector<4x8x8xf32> to vector<1x8x8xf32>
    %81 = vector.shape_cast %80 : vector<1x8x8xf32> to vector<8x8xf32>
    %82 = vector.extract_strided_slice %79 {offsets = [1, 0, 0], sizes = [1, 8, 8], strides = [1, 1, 1]} : vector<4x8x8xf32> to vector<1x8x8xf32>
    %83 = vector.shape_cast %82 : vector<1x8x8xf32> to vector<8x8xf32>
    %84 = vector.extract_strided_slice %79 {offsets = [2, 0, 0], sizes = [1, 8, 8], strides = [1, 1, 1]} : vector<4x8x8xf32> to vector<1x8x8xf32>
    %85 = vector.shape_cast %84 : vector<1x8x8xf32> to vector<8x8xf32>
    %86 = vector.extract_strided_slice %79 {offsets = [3, 0, 0], sizes = [1, 8, 8], strides = [1, 1, 1]} : vector<4x8x8xf32> to vector<1x8x8xf32>
    %87 = vector.shape_cast %86 : vector<1x8x8xf32> to vector<8x8xf32>
    %88 = tpu.concatenate %81, %83, %85, %87 in 1 : vector<8x8xf32>, vector<8x8xf32>, vector<8x8xf32>, vector<8x8xf32> -> vector<8x32xf32>
    %c0_24 = arith.constant 0 : index
    %c0_25 = arith.constant 0 : index
    %c0_26 = arith.constant 0 : index
    %89 = vector.load %arg7[%c0_24, %c0_25, %c0_26] : memref<1x32x32xf32, #tpu.memory_space<vmem>>, vector<1x32x32xf32>
    %90 = vector.shape_cast %89 : vector<1x32x32xf32> to vector<32x32xf32>
    %cst_27 = arith.constant dense<0.000000e+00> : vector<8x32xf32>
    %91 = tpu.matmul %88, %90, %cst_27 {dimension_numbers = #tpu.dot_dimension_numbers<[1], [0], [0], [1], [0, 0, 1, 1], [], []>} : vector<8x32xf32>, vector<32x32xf32>, vector<8x32xf32> -> vector<8x32xf32>
    %c0_28 = arith.constant 0 : index
    %c0_29 = arith.constant 0 : index
    %c0_30 = arith.constant 0 : index
    %92 = vector.load %arg8[%c0_28, %c0_29, %c0_30] : memref<1x1x32xf32, #tpu.memory_space<vmem>>, vector<1x1x32xf32>
    %93 = vector.shape_cast %92 : vector<1x1x32xf32> to vector<1x32xf32>
    %94 = vector.broadcast %93 : vector<1x32xf32> to vector<8x32xf32>
    %95 = arith.addf %91, %94 : vector<8x32xf32>
    %96 = arith.addf %3, %95 : vector<8x32xf32>
    %c0_31 = arith.constant 0 : index
    %c0_32 = arith.constant 0 : index
    %c0_33 = arith.constant 0 : index
    %97 = vector.load %arg9[%c0_31, %c0_32, %c0_33] : memref<1x1x32xf32, #tpu.memory_space<vmem>>, vector<1x1x32xf32>
    %98 = vector.shape_cast %97 : vector<1x1x32xf32> to vector<1x32xf32>
    %c0_34 = arith.constant 0 : index
    %c0_35 = arith.constant 0 : index
    %c0_36 = arith.constant 0 : index
    %99 = vector.load %arg10[%c0_34, %c0_35, %c0_36] : memref<1x1x32xf32, #tpu.memory_space<vmem>>, vector<1x1x32xf32>
    %100 = vector.shape_cast %99 : vector<1x1x32xf32> to vector<1x32xf32>
    %cst_37 = arith.constant dense<0.000000e+00> : vector<8xf32>
    %101 = vector.multi_reduction <add>, %96, %cst_37 [1] : vector<8x32xf32> to vector<8xf32>
    %102 = vector.shape_cast %101 : vector<8xf32> to vector<8x1xf32>
    %cst_38 = arith.constant 3.200000e+01 : f32
    %103 = vector.broadcast %cst_38 : f32 to vector<8x1xf32>
    %104 = arith.divf %102, %103 : vector<8x1xf32>
    %105 = vector.broadcast %104 : vector<8x1xf32> to vector<8x32xf32>
    %106 = arith.subf %96, %105 : vector<8x32xf32>
    %107 = arith.mulf %106, %106 : vector<8x32xf32>
    %cst_39 = arith.constant dense<0.000000e+00> : vector<8xf32>
    %108 = vector.multi_reduction <add>, %107, %cst_39 [1] : vector<8x32xf32> to vector<8xf32>
    %109 = vector.shape_cast %108 : vector<8xf32> to vector<8x1xf32>
    %cst_40 = arith.constant 3.200000e+01 : f32
    %110 = vector.broadcast %cst_40 : f32 to vector<8x1xf32>
    %111 = arith.divf %109, %110 : vector<8x1xf32>
    %112 = vector.broadcast %104 : vector<8x1xf32> to vector<8x32xf32>
    %113 = arith.subf %96, %112 : vector<8x32xf32>
    %cst_41 = arith.constant 9.99999974E-6 : f32
    %114 = vector.broadcast %cst_41 : f32 to vector<8x1xf32>
    %115 = arith.addf %111, %114 : vector<8x1xf32>
    %116 = math.sqrt %115 : vector<8x1xf32>
    %117 = vector.broadcast %116 : vector<8x1xf32> to vector<8x32xf32>
    %118 = arith.divf %113, %117 : vector<8x32xf32>
    %119 = vector.broadcast %98 : vector<1x32xf32> to vector<8x32xf32>
    %120 = arith.mulf %119, %118 : vector<8x32xf32>
    %121 = vector.broadcast %100 : vector<1x32xf32> to vector<8x32xf32>
    %122 = arith.addf %120, %121 : vector<8x32xf32>
    %c0_42 = arith.constant 0 : index
    %c0_43 = arith.constant 0 : index
    %c0_44 = arith.constant 0 : index
    %123 = vector.load %arg11[%c0_42, %c0_43, %c0_44] : memref<1x32x128xf32, #tpu.memory_space<vmem>>, vector<1x32x128xf32>
    %124 = vector.shape_cast %123 : vector<1x32x128xf32> to vector<32x128xf32>
    %cst_45 = arith.constant dense<0.000000e+00> : vector<8x128xf32>
    %125 = tpu.matmul %122, %124, %cst_45 {dimension_numbers = #tpu.dot_dimension_numbers<[1], [0], [0], [1], [0, 0, 1, 1], [], []>} : vector<8x32xf32>, vector<32x128xf32>, vector<8x128xf32> -> vector<8x128xf32>
    %c0_46 = arith.constant 0 : index
    %c0_47 = arith.constant 0 : index
    %c0_48 = arith.constant 0 : index
    %126 = vector.load %arg12[%c0_46, %c0_47, %c0_48] : memref<1x1x128xf32, #tpu.memory_space<vmem>>, vector<1x1x128xf32>
    %127 = vector.shape_cast %126 : vector<1x1x128xf32> to vector<1x128xf32>
    %128 = vector.broadcast %127 : vector<1x128xf32> to vector<8x128xf32>
    %129 = arith.addf %125, %128 : vector<8x128xf32>
    %cst_49 = arith.constant 5.000000e-01 : f32
    %130 = vector.broadcast %cst_49 : f32 to vector<8x128xf32>
    %131 = arith.mulf %130, %129 : vector<8x128xf32>
    %cst_50 = arith.constant 4.471500e-02 : f32
    %132 = vector.broadcast %cst_50 : f32 to vector<8x128xf32>
    %133 = arith.mulf %132, %129 : vector<8x128xf32>
    %134 = arith.mulf %133, %129 : vector<8x128xf32>
    %135 = arith.mulf %134, %129 : vector<8x128xf32>
    %136 = arith.addf %129, %135 : vector<8x128xf32>
    %cst_51 = arith.constant 0.797884583 : f32
    %137 = vector.broadcast %cst_51 : f32 to vector<8x128xf32>
    %138 = arith.mulf %137, %136 : vector<8x128xf32>
    %139 = math.tanh %138 : vector<8x128xf32>
    %cst_52 = arith.constant 1.000000e+00 : f32
    %140 = vector.broadcast %cst_52 : f32 to vector<8x128xf32>
    %141 = arith.addf %140, %139 : vector<8x128xf32>
    %142 = arith.mulf %131, %141 : vector<8x128xf32>
    %c0_53 = arith.constant 0 : index
    %c0_54 = arith.constant 0 : index
    %c0_55 = arith.constant 0 : index
    %143 = vector.load %arg13[%c0_53, %c0_54, %c0_55] : memref<1x128x32xf32, #tpu.memory_space<vmem>>, vector<1x128x32xf32>
    %144 = vector.shape_cast %143 : vector<1x128x32xf32> to vector<128x32xf32>
    %cst_56 = arith.constant dense<0.000000e+00> : vector<8x32xf32>
    %145 = tpu.matmul %142, %144, %cst_56 {dimension_numbers = #tpu.dot_dimension_numbers<[1], [0], [0], [1], [0, 0, 1, 1], [], []>} : vector<8x128xf32>, vector<128x32xf32>, vector<8x32xf32> -> vector<8x32xf32>
    %c0_57 = arith.constant 0 : index
    %c0_58 = arith.constant 0 : index
    %c0_59 = arith.constant 0 : index
    %146 = vector.load %arg14[%c0_57, %c0_58, %c0_59] : memref<1x1x32xf32, #tpu.memory_space<vmem>>, vector<1x1x32xf32>
    %147 = vector.shape_cast %146 : vector<1x1x32xf32> to vector<1x32xf32>
    %148 = vector.broadcast %147 : vector<1x32xf32> to vector<8x32xf32>
    %149 = arith.addf %145, %148 : vector<8x32xf32>
    %150 = arith.addf %96, %149 : vector<8x32xf32>
    %c0_60 = arith.constant 0 : index
    %c0_61 = arith.constant 0 : index
    %151 = vector.load %arg19[%c0_60, %c0_61] : memref<8x32xf32, #tpu.memory_space<vmem>>, vector<8x32xf32>
    tpu.vector_store %arg19[%c0_60, %c0_61], %150 {strides = array<i32>} : memref<8x32xf32, #tpu.memory_space<vmem>>, vector<8x32xf32>,
    %c1_i32 = arith.constant 1 : i32
    %152 = arith.cmpi eq, %arg1, %c1_i32 : i32
    %153 = arith.extui %152 : i1 to i32
    %c0_i32_62 = arith.constant 0 : i32
    %154 = arith.cmpi ne, %153, %c0_i32_62 : i32
    scf.if %154 {
      %c0_63 = arith.constant 0 : index
      %c0_64 = arith.constant 0 : index
      %155 = vector.load %arg15[%c0_63, %c0_64] : memref<1x32xf32, #tpu.memory_space<vmem>>, vector<1x32xf32>
      %c0_65 = arith.constant 0 : index
      %c0_66 = arith.constant 0 : index
      %156 = vector.load %arg16[%c0_65, %c0_66] : memref<1x32xf32, #tpu.memory_space<vmem>>, vector<1x32xf32>
      %cst_67 = arith.constant dense<0.000000e+00> : vector<8xf32>
      %157 = vector.multi_reduction <add>, %150, %cst_67 [1] : vector<8x32xf32> to vector<8xf32>
      %158 = vector.shape_cast %157 : vector<8xf32> to vector<8x1xf32>
      %cst_68 = arith.constant 3.200000e+01 : f32
      %159 = vector.broadcast %cst_68 : f32 to vector<8x1xf32>
      %160 = arith.divf %158, %159 : vector<8x1xf32>
      %161 = vector.broadcast %160 : vector<8x1xf32> to vector<8x32xf32>
      %162 = arith.subf %150, %161 : vector<8x32xf32>
      %163 = arith.mulf %162, %162 : vector<8x32xf32>
      %cst_69 = arith.constant dense<0.000000e+00> : vector<8xf32>
      %164 = vector.multi_reduction <add>, %163, %cst_69 [1] : vector<8x32xf32> to vector<8xf32>
      %165 = vector.shape_cast %164 : vector<8xf32> to vector<8x1xf32>
      %cst_70 = arith.constant 3.200000e+01 : f32
      %166 = vector.broadcast %cst_70 : f32 to vector<8x1xf32>
      %167 = arith.divf %165, %166 : vector<8x1xf32>
      %168 = vector.broadcast %160 : vector<8x1xf32> to vector<8x32xf32>
      %169 = arith.subf %150, %168 : vector<8x32xf32>
      %cst_71 = arith.constant 9.99999974E-6 : f32
      %170 = vector.broadcast %cst_71 : f32 to vector<8x1xf32>
      %171 = arith.addf %167, %170 : vector<8x1xf32>
      %172 = math.sqrt %171 : vector<8x1xf32>
      %173 = vector.broadcast %172 : vector<8x1xf32> to vector<8x32xf32>
      %174 = arith.divf %169, %173 : vector<8x32xf32>
      %175 = vector.broadcast %155 : vector<1x32xf32> to vector<8x32xf32>
      %176 = arith.mulf %175, %174 : vector<8x32xf32>
      %177 = vector.broadcast %156 : vector<1x32xf32> to vector<8x32xf32>
      %178 = arith.addf %176, %177 : vector<8x32xf32>
      %c0_72 = arith.constant 0 : index
      %c0_73 = arith.constant 0 : index
      %179 = vector.load %arg17[%c0_72, %c0_73] : memref<32x256xf32, #tpu.memory_space<vmem>>, vector<32x256xf32>
      %cst_74 = arith.constant dense<0.000000e+00> : vector<8x256xf32>
      %180 = tpu.matmul %178, %179, %cst_74 {dimension_numbers = #tpu.dot_dimension_numbers<[1], [0], [0], [1], [0, 0, 1, 1], [], []>} : vector<8x32xf32>, vector<32x256xf32>, vector<8x256xf32> -> vector<8x256xf32>
      %c0_75 = arith.constant 0 : index
      %c0_76 = arith.constant 0 : index
      %c0_77 = arith.constant 0 : index
      %181 = vector.load %arg18[%c0_75, %c0_76, %c0_77] : memref<1x8x256xf32, #tpu.memory_space<vmem>>, vector<1x8x256xf32>
      %182 = vector.shape_cast %181 : vector<1x8x256xf32> to vector<8x256xf32>
      %183 = vector.shape_cast %180 : vector<8x256xf32> to vector<1x8x256xf32>
      tpu.vector_store %arg18[%c0_75, %c0_76, %c0_77], %183 {strides = array<i32>} : memref<1x8x256xf32, #tpu.memory_space<vmem>>, vector<1x8x256xf32>,
    } else {
    }
    return
  }
  func.func @transform_0(%arg0: i32, %arg1: i32) -> (i32, i32, i32) {
    %c0_i32 = arith.constant 0 : i32
    %c0_i32_0 = arith.constant 0 : i32
    %c0_i32_1 = arith.constant 0 : i32
    return %arg0, %c0_i32, %c0_i32_0 : i32, i32, i32
  }
  func.func @transform_1(%arg0: i32, %arg1: i32) -> (i32, i32, i32) {
    %c0_i32 = arith.constant 0 : i32
    %c0_i32_0 = arith.constant 0 : i32
    %c0_i32_1 = arith.constant 0 : i32
    %c0_i32_2 = arith.constant 0 : i32
    return %c0_i32, %c0_i32_0, %c0_i32_1 : i32, i32, i32
  }
  func.func @transform_2(%arg0: i32, %arg1: i32) -> (i32, i32, i32) {
    %c0_i32 = arith.constant 0 : i32
    %c0_i32_0 = arith.constant 0 : i32
    %c0_i32_1 = arith.constant 0 : i32
    return %arg1, %c0_i32, %c0_i32_0 : i32, i32, i32
  }
  func.func @transform_3(%arg0: i32, %arg1: i32) -> (i32, i32, i32) {
    %c0_i32 = arith.constant 0 : i32
    %c0_i32_0 = arith.constant 0 : i32
    %c0_i32_1 = arith.constant 0 : i32
    return %arg1, %c0_i32, %c0_i32_0 : i32, i32, i32
  }
  func.func @transform_4(%arg0: i32, %arg1: i32) -> (i32, i32, i32) {
    %c0_i32 = arith.constant 0 : i32
    %c0_i32_0 = arith.constant 0 : i32
    %c0_i32_1 = arith.constant 0 : i32
    return %arg1, %c0_i32, %c0_i32_0 : i32, i32, i32
  }
  func.func @transform_5(%arg0: i32, %arg1: i32) -> (i32, i32, i32) {
    %c0_i32 = arith.constant 0 : i32
    %c0_i32_0 = arith.constant 0 : i32
    %c0_i32_1 = arith.constant 0 : i32
    return %arg1, %c0_i32, %c0_i32_0 : i32, i32, i32
  }
  func.func @transform_6(%arg0: i32, %arg1: i32) -> (i32, i32, i32) {
    %c0_i32 = arith.constant 0 : i32
    %c0_i32_0 = arith.constant 0 : i32
    %c0_i32_1 = arith.constant 0 : i32
    return %arg1, %c0_i32, %c0_i32_0 : i32, i32, i32
  }
  func.func @transform_7(%arg0: i32, %arg1: i32) -> (i32, i32, i32) {
    %c0_i32 = arith.constant 0 : i32
    %c0_i32_0 = arith.constant 0 : i32
    %c0_i32_1 = arith.constant 0 : i32
    return %arg1, %c0_i32, %c0_i32_0 : i32, i32, i32
  }
  func.func @transform_8(%arg0: i32, %arg1: i32) -> (i32, i32, i32) {
    %c0_i32 = arith.constant 0 : i32
    %c0_i32_0 = arith.constant 0 : i32
    %c0_i32_1 = arith.constant 0 : i32
    return %arg1, %c0_i32, %c0_i32_0 : i32, i32, i32
  }
  func.func @transform_9(%arg0: i32, %arg1: i32) -> (i32, i32, i32) {
    %c0_i32 = arith.constant 0 : i32
    %c0_i32_0 = arith.constant 0 : i32
    %c0_i32_1 = arith.constant 0 : i32
    return %arg1, %c0_i32, %c0_i32_0 : i32, i32, i32
  }
  func.func @transform_10(%arg0: i32, %arg1: i32) -> (i32, i32, i32) {
    %c0_i32 = arith.constant 0 : i32
    %c0_i32_0 = arith.constant 0 : i32
    %c0_i32_1 = arith.constant 0 : i32
    return %arg1, %c0_i32, %c0_i32_0 : i32, i32, i32
  }
  func.func @transform_11(%arg0: i32, %arg1: i32) -> (i32, i32, i32) {
    %c0_i32 = arith.constant 0 : i32
    %c0_i32_0 = arith.constant 0 : i32
    %c0_i32_1 = arith.constant 0 : i32
    return %arg1, %c0_i32, %c0_i32_0 : i32, i32, i32
  }
  func.func @transform_12(%arg0: i32, %arg1: i32) -> (i32, i32, i32) {
    %c0_i32 = arith.constant 0 : i32
    %c0_i32_0 = arith.constant 0 : i32
    %c0_i32_1 = arith.constant 0 : i32
    return %arg1, %c0_i32, %c0_i32_0 : i32, i32, i32
  }
  func.func @transform_13(%arg0: i32, %arg1: i32) -> (i32, i32) {
    %c0_i32 = arith.constant 0 : i32
    %c0_i32_0 = arith.constant 0 : i32
    %c0_i32_1 = arith.constant 0 : i32
    return %c0_i32, %c0_i32_0 : i32, i32
  }
  func.func @transform_14(%arg0: i32, %arg1: i32) -> (i32, i32) {
    %c0_i32 = arith.constant 0 : i32
    %c0_i32_0 = arith.constant 0 : i32
    %c0_i32_1 = arith.constant 0 : i32
    return %c0_i32, %c0_i32_0 : i32, i32
  }
  func.func @transform_15(%arg0: i32, %arg1: i32) -> (i32, i32) {
    %c0_i32 = arith.constant 0 : i32
    %c0_i32_0 = arith.constant 0 : i32
    %c0_i32_1 = arith.constant 0 : i32
    return %c0_i32, %c0_i32_0 : i32, i32
  }
  func.func @transform_16(%arg0: i32, %arg1: i32) -> (i32, i32, i32) {
    %c0_i32 = arith.constant 0 : i32
    %c0_i32_0 = arith.constant 0 : i32
    %c0_i32_1 = arith.constant 0 : i32
    return %arg0, %c0_i32, %c0_i32_0 : i32, i32, i32
  }
}

</mosaic_0001>

<llo_original>
// kernel: tpu_custom_call.1
$region0: #{tpu_custom_call.1}
  #allocation0 [shape = 'u32[]', space=smem, size = 0x4, offset = 0x4, fixed_abs, tag = 'smem constant byte address 0x4 - core index']
  #allocation1 [shape = 'u32[144,128]{1,0:T(1,128)}', space=vmem, size = 0x12000, scoped, tag = 'internal scratch']
  #allocation2 [shape = 'f32[8,32]{1,0:T(8,128)}', space=vmem, size = 0x1000, scoped, tag = 'scratch operand']
  %s0 = inlined_call_operand.vmem [shape: f32[2,8,32], index: 0, kind: input, shape index: {}]
  %s1 = inlined_call_operand.vmem [shape: f32[1,8,8], index: 1, kind: input, shape index: {}]
  %s2 = inlined_call_operand.vmem [shape: f32[2,1,32], index: 2, kind: input, shape index: {}]
  %s3 = inlined_call_operand.vmem [shape: f32[2,1,32], index: 3, kind: input, shape index: {}]
  %s4 = inlined_call_operand.vmem [shape: f32[2,32,96], index: 4, kind: input, shape index: {}]
  %s5 = inlined_call_operand.vmem [shape: f32[2,32,32], index: 5, kind: input, shape index: {}]
  %s6 = inlined_call_operand.vmem [shape: f32[2,1,32], index: 6, kind: input, shape index: {}]
  %s7 = inlined_call_operand.vmem [shape: f32[2,1,32], index: 7, kind: input, shape index: {}]
  %s8 = inlined_call_operand.vmem [shape: f32[2,1,32], index: 8, kind: input, shape index: {}]
  %s9 = inlined_call_operand.vmem [shape: f32[2,32,128], index: 9, kind: input, shape index: {}]
  %s10 = inlined_call_operand.vmem [shape: f32[2,1,128], index: 10, kind: input, shape index: {}]
  %s11 = inlined_call_operand.vmem [shape: f32[2,128,32], index: 11, kind: input, shape index: {}]
  %s12 = inlined_call_operand.vmem [shape: f32[2,1,32], index: 12, kind: input, shape index: {}]
  %s13 = inlined_call_operand.vmem [shape: f32[1,32], index: 13, kind: input, shape index: {}]
  %s14 = inlined_call_operand.vmem [shape: f32[1,32], index: 14, kind: input, shape index: {}]
  %s15 = inlined_call_operand.vmem [shape: f32[32,256], index: 15, kind: input, shape index: {}]
  %s16 = inlined_call_operand.hbm [shape: f32[2,8,256], index: 16, kind: output, shape index: {}]
  %s17 = sld [smem:[#allocation0]]
  $region105: #{tpu_custom_call.1} parent=0
    _
  %s19 = ssub.s32 1, %s17
  %s20 = scalar_select 0, %s19, %s17
  $region1: #{tpu_custom_call.1} parent=0
    #allocation3 [shape = 'u8[16384]{0}', space=vmem, size = 0x4000, scoped, tag = 'output window, operand 0']
    #allocation4 [shape = 's32[2]{0}', space=sflag, size = 0x8, scoped, tag = 'scoped memory for tpu_custom_call.1']
    %21 = vsyncpa [#allocation4], 0
    %s22 = scalar_lea.sflag [#allocation4], 1
    %23 = vsyncpa %s22, 0
    loop: start=0, step=1, limit=6
    $region2: #{tpu_custom_call.1} parent=1 // loop_pre_header
      _
    $region3: #{tpu_custom_call.1} parent=1 // loop_header
      %s25 = sphi 0, %s29
      %p26 = scmp.ge.s32.totalorder %s25, 6
      %s32 = sphi 0, %s44
      %s33 = sphi 0, %s40
      %s34 = sphi 0, %s32
      %s35 = sphi 0, %s33
      %s36 = sphi 0, %s34
      %s37 = sphi 0, %s35
      %s47 = sphi 0, %s49
      %s50 = sphi 0, %s47
      %s51 = sphi 0, %s50
      %s67 = sphi 0, %s51
      %s71 = sphi 0, %s71
      %s73 = sphi 0, %s71
      %s74 = sphi 0, %s73
      %s88 = sphi 0, %s74
      %s94 = sphi 0, %s96
      %s97 = sphi 0, %s94
      %s98 = sphi 0, %s97
      %s114 = sphi 0, %s98
      %s120 = sphi 0, %s122
      %s123 = sphi 0, %s120
      %s124 = sphi 0, %s123
      %s140 = sphi 0, %s124
      %s146 = sphi 0, %s148
      %s149 = sphi 0, %s146
      %s150 = sphi 0, %s149
      %s166 = sphi 0, %s150
      %s172 = sphi 0, %s174
      %s175 = sphi 0, %s172
      %s176 = sphi 0, %s175
      %s192 = sphi 0, %s176
      %s198 = sphi 0, %s200
      %s201 = sphi 0, %s198
      %s202 = sphi 0, %s201
      %s218 = sphi 0, %s202
      %s224 = sphi 0, %s226
      %s227 = sphi 0, %s224
      %s228 = sphi 0, %s227
      %s244 = sphi 0, %s228
      %s250 = sphi 0, %s252
      %s253 = sphi 0, %s250
      %s254 = sphi 0, %s253
      %s270 = sphi 0, %s254
      %s276 = sphi 0, %s278
      %s279 = sphi 0, %s276
      %s280 = sphi 0, %s279
      %s296 = sphi 0, %s280
      %s302 = sphi 0, %s304
      %s305 = sphi 0, %s302
      %s306 = sphi 0, %s305
      %s322 = sphi 0, %s306
      %s328 = sphi 0, %s330
      %s331 = sphi 0, %s328
      %s332 = sphi 0, %s331
      %s348 = sphi 0, %s332
      %s354 = sphi 0, %s356
      %s357 = sphi 0, %s354
      %s358 = sphi 0, %s357
      %s374 = sphi 0, %s358
      %s378 = sphi 0, %s378
      %s380 = sphi 0, %s378
      %s381 = sphi 0, %s380
      %s395 = sphi 0, %s381
      %s399 = sphi 0, %s399
      %s401 = sphi 0, %s399
      %s402 = sphi 0, %s401
      %s416 = sphi 0, %s402
      %s420 = sphi 0, %s420
      %s422 = sphi 0, %s420
      %s423 = sphi 0, %s422
      %s437 = sphi 0, %s423
      %s443 = sphi 0, %s445
      %s446 = sphi 0, %s443
      %s447 = sphi 0, %s446
      %s463 = sphi 0, %s447
    $region4: #{tpu_custom_call.1} parent=1 // loop_header_branch
      %28 = sbr.rel (%p26) target = $region8
    $region5: #{tpu_custom_call.1} parent=1 // loop_body
      %s30 = ssub.s32 %s25, 1
      %s31 = ssub.s32 %s25, 2
      %s38 = sadd.s32 1, %s33
      %p39 = scmp.ge.s32.totalorder %s38, 2
      %s40 = scalar_select %p39, 0, %s38
      %s41 = sadd.s32 1, %s32
      %s42 = scalar_select %p39, %s41, %s32
      %p43 = scmp.ge.s32.totalorder %s42, 2
      %s44 = scalar_select %p43, 0, %s42
      %s45 = ssub.s32 %s32, %s44
      %p46 = scmp.eq.s32.totalorder %s45, 0
      %s48 = sadd.s32 %s47, 1
      %s49 = scalar_select %p46, %s47, %s48
      %p52 = pneg %p46
      %p53 = scmp.eq.s32.totalorder %s25, 3
      %p54 = por %p52, %p53
      %p55 = scmp.ne.s32.totalorder %s47, %s50
      %p56 = scmp.eq.s32.totalorder %s25, 0
      %p57 = por %p55, %p56
      %p58 = scmp.ne.s32.totalorder %s47, %s50
      %p59 = scmp.eq.s32.totalorder %s30, 3
      %p60 = por %p58, %p59
      %p61 = scmp.ne.s32.totalorder %s50, %s51
      %p62 = scmp.eq.s32.totalorder %s30, 0
      %p63 = por %p61, %p62
      %p64 = scmp.ne.s32.totalorder %s50, %s51
      %p65 = scmp.eq.s32.totalorder %s31, 3
      %p66 = por %p64, %p65
      %p68 = scmp.ne.s32.totalorder %s51, %s67
      %p69 = scmp.eq.s32.totalorder %s31, 0
      %p70 = por %p68, %p69
      %s72 = sadd.s32 %s71, 1
      %p75 = scmp.eq.s32.totalorder %s25, 3
      %p76 = scmp.ne.s32.totalorder %s71, %s73
      %p77 = scmp.eq.s32.totalorder %s25, 0
      %p78 = por %p76, %p77
      %p79 = scmp.ne.s32.totalorder %s71, %s73
      %p80 = scmp.eq.s32.totalorder %s30, 3
      %p81 = por %p79, %p80
      %p82 = scmp.ne.s32.totalorder %s73, %s74
      %p83 = scmp.eq.s32.totalorder %s30, 0
      %p84 = por %p82, %p83
      %p85 = scmp.ne.s32.totalorder %s73, %s74
      %p86 = scmp.eq.s32.totalorder %s31, 3
      %p87 = por %p85, %p86
      %p89 = scmp.ne.s32.totalorder %s74, %s88
      %p90 = scmp.eq.s32.totalorder %s31, 0
      %p91 = por %p89, %p90
      %s92 = ssub.s32 %s33, %s40
      %p93 = scmp.eq.s32.totalorder %s92, 0
      %s95 = sadd.s32 %s94, 1
      %s96 = scalar_select %p93, %s94, %s95
      %p99 = pneg %p93
      %p100 = scmp.eq.s32.totalorder %s25, 3
      %p101 = por %p99, %p100
      %p102 = scmp.ne.s32.totalorder %s94, %s97
      %p103 = scmp.eq.s32.totalorder %s25, 0
      %p104 = por %p102, %p103
      %p105 = scmp.ne.s32.totalorder %s94, %s97
      %p106 = scmp.eq.s32.totalorder %s30, 3
      %p107 = por %p105, %p106
      %p108 = scmp.ne.s32.totalorder %s97, %s98
      %p109 = scmp.eq.s32.totalorder %s30, 0
      %p110 = por %p108, %p109
      %p111 = scmp.ne.s32.totalorder %s97, %s98
      %p112 = scmp.eq.s32.totalorder %s31, 3
      %p113 = por %p111, %p112
      %p115 = scmp.ne.s32.totalorder %s98, %s114
      %p116 = scmp.eq.s32.totalorder %s31, 0
      %p117 = por %p115, %p116
      %s118 = ssub.s32 %s33, %s40
      %p119 = scmp.eq.s32.totalorder %s118, 0
      %s121 = sadd.s32 %s120, 1
      %s122 = scalar_select %p119, %s120, %s121
      %p125 = pneg %p119
      %p126 = scmp.eq.s32.totalorder %s25, 3
      %p127 = por %p125, %p126
      %p128 = scmp.ne.s32.totalorder %s120, %s123
      %p129 = scmp.eq.s32.totalorder %s25, 0
      %p130 = por %p128, %p129
      %p131 = scmp.ne.s32.totalorder %s120, %s123
      %p132 = scmp.eq.s32.totalorder %s30, 3
      %p133 = por %p131, %p132
      %p134 = scmp.ne.s32.totalorder %s123, %s124
      %p135 = scmp.eq.s32.totalorder %s30, 0
      %p136 = por %p134, %p135
      %p137 = scmp.ne.s32.totalorder %s123, %s124
      %p138 = scmp.eq.s32.totalorder %s31, 3
      %p139 = por %p137, %p138
      %p141 = scmp.ne.s32.totalorder %s124, %s140
      %p142 = scmp.eq.s32.totalorder %s31, 0
      %p143 = por %p141, %p142
      %s144 = ssub.s32 %s33, %s40
      %p145 = scmp.eq.s32.totalorder %s144, 0
      %s147 = sadd.s32 %s146, 1
      %s148 = scalar_select %p145, %s146, %s147
      %p151 = pneg %p145
      %p152 = scmp.eq.s32.totalorder %s25, 3
      %p153 = por %p151, %p152
      %p154 = scmp.ne.s32.totalorder %s146, %s149
      %p155 = scmp.eq.s32.totalorder %s25, 0
      %p156 = por %p154, %p155
      %p157 = scmp.ne.s32.totalorder %s146, %s149
      %p158 = scmp.eq.s32.totalorder %s30, 3
      %p159 = por %p157, %p158
      %p160 = scmp.ne.s32.totalorder %s149, %s150
      %p161 = scmp.eq.s32.totalorder %s30, 0
      %p162 = por %p160, %p161
      %p163 = scmp.ne.s32.totalorder %s149, %s150
      %p164 = scmp.eq.s32.totalorder %s31, 3
      %p165 = por %p163, %p164
      %p167 = scmp.ne.s32.totalorder %s150, %s166
      %p168 = scmp.eq.s32.totalorder %s31, 0
      %p169 = por %p167, %p168
      %s170 = ssub.s32 %s33, %s40
      %p171 = scmp.eq.s32.totalorder %s170, 0
      %s173 = sadd.s32 %s172, 1
      %s174 = scalar_select %p171, %s172, %s173
      %p177 = pneg %p171
      %p178 = scmp.eq.s32.totalorder %s25, 3
      %p179 = por %p177, %p178
      %p180 = scmp.ne.s32.totalorder %s172, %s175
      %p181 = scmp.eq.s32.totalorder %s25, 0
      %p182 = por %p180, %p181
      %p183 = scmp.ne.s32.totalorder %s172, %s175
      %p184 = scmp.eq.s32.totalorder %s30, 3
      %p185 = por %p183, %p184
      %p186 = scmp.ne.s32.totalorder %s175, %s176
      %p187 = scmp.eq.s32.totalorder %s30, 0
      %p188 = por %p186, %p187
      %p189 = scmp.ne.s32.totalorder %s175, %s176
      %p190 = scmp.eq.s32.totalorder %s31, 3
      %p191 = por %p189, %p190
      %p193 = scmp.ne.s32.totalorder %s176, %s192
      %p194 = scmp.eq.s32.totalorder %s31, 0
      %p195 = por %p193, %p194
      %s196 = ssub.s32 %s33, %s40
      %p197 = scmp.eq.s32.totalorder %s196, 0
      %s199 = sadd.s32 %s198, 1
      %s200 = scalar_select %p197, %s198, %s199
      %p203 = pneg %p197
      %p204 = scmp.eq.s32.totalorder %s25, 3
      %p205 = por %p203, %p204
      %p206 = scmp.ne.s32.totalorder %s198, %s201
      %p207 = scmp.eq.s32.totalorder %s25, 0
      %p208 = por %p206, %p207
      %p209 = scmp.ne.s32.totalorder %s198, %s201
      %p210 = scmp.eq.s32.totalorder %s30, 3
      %p211 = por %p209, %p210
      %p212 = scmp.ne.s32.totalorder %s201, %s202
      %p213 = scmp.eq.s32.totalorder %s30, 0
      %p214 = por %p212, %p213
      %p215 = scmp.ne.s32.totalorder %s201, %s202
      %p216 = scmp.eq.s32.totalorder %s31, 3
      %p217 = por %p215, %p216
      %p219 = scmp.ne.s32.totalorder %s202, %s218
      %p220 = scmp.eq.s32.totalorder %s31, 0
      %p221 = por %p219, %p220
      %s222 = ssub.s32 %s33, %s40
      %p223 = scmp.eq.s32.totalorder %s222, 0
      %s225 = sadd.s32 %s224, 1
      %s226 = scalar_select %p223, %s224, %s225
      %p229 = pneg %p223
      %p230 = scmp.eq.s32.totalorder %s25, 3
      %p231 = por %p229, %p230
      %p232 = scmp.ne.s32.totalorder %s224, %s227
      %p233 = scmp.eq.s32.totalorder %s25, 0
      %p234 = por %p232, %p233
      %p235 = scmp.ne.s32.totalorder %s224, %s227
      %p236 = scmp.eq.s32.totalorder %s30, 3
      %p237 = por %p235, %p236
      %p238 = scmp.ne.s32.totalorder %s227, %s228
      %p239 = scmp.eq.s32.totalorder %s30, 0
      %p240 = por %p238, %p239
      %p241 = scmp.ne.s32.totalorder %s227, %s228
      %p242 = scmp.eq.s32.totalorder %s31, 3
      %p243 = por %p241, %p242
      %p245 = scmp.ne.s32.totalorder %s228, %s244
      %p246 = scmp.eq.s32.totalorder %s31, 0
      %p247 = por %p245, %p246
      %s248 = ssub.s32 %s33, %s40
      %p249 = scmp.eq.s32.totalorder %s248, 0
      %s251 = sadd.s32 %s250, 1
      %s252 = scalar_select %p249, %s250, %s251
      %p255 = pneg %p249
      %p256 = scmp.eq.s32.totalorder %s25, 3
      %p257 = por %p255, %p256
      %p258 = scmp.ne.s32.totalorder %s250, %s253
      %p259 = scmp.eq.s32.totalorder %s25, 0
      %p260 = por %p258, %p259
      %p261 = scmp.ne.s32.totalorder %s250, %s253
      %p262 = scmp.eq.s32.totalorder %s30, 3
      %p263 = por %p261, %p262
      %p264 = scmp.ne.s32.totalorder %s253, %s254
      %p265 = scmp.eq.s32.totalorder %s30, 0
      %p266 = por %p264, %p265
      %p267 = scmp.ne.s32.totalorder %s253, %s254
      %p268 = scmp.eq.s32.totalorder %s31, 3
      %p269 = por %p267, %p268
      %p271 = scmp.ne.s32.totalorder %s254, %s270
      %p272 = scmp.eq.s32.totalorder %s31, 0
      %p273 = por %p271, %p272
      %s274 = ssub.s32 %s33, %s40
      %p275 = scmp.eq.s32.totalorder %s274, 0
      %s277 = sadd.s32 %s276, 1
      %s278 = scalar_select %p275, %s276, %s277
      %p281 = pneg %p275
      %p282 = scmp.eq.s32.totalorder %s25, 3
      %p283 = por %p281, %p282
      %p284 = scmp.ne.s32.totalorder %s276, %s279
      %p285 = scmp.eq.s32.totalorder %s25, 0
      %p286 = por %p284, %p285
      %p287 = scmp.ne.s32.totalorder %s276, %s279
      %p288 = scmp.eq.s32.totalorder %s30, 3
      %p289 = por %p287, %p288
      %p290 = scmp.ne.s32.totalorder %s279, %s280
      %p291 = scmp.eq.s32.totalorder %s30, 0
      %p292 = por %p290, %p291
      %p293 = scmp.ne.s32.totalorder %s279, %s280
      %p294 = scmp.eq.s32.totalorder %s31, 3
      %p295 = por %p293, %p294
      %p297 = scmp.ne.s32.totalorder %s280, %s296
      %p298 = scmp.eq.s32.totalorder %s31, 0
      %p299 = por %p297, %p298
      %s300 = ssub.s32 %s33, %s40
      %p301 = scmp.eq.s32.totalorder %s300, 0
      %s303 = sadd.s32 %s302, 1
      %s304 = scalar_select %p301, %s302, %s303
      %p307 = pneg %p301
      %p308 = scmp.eq.s32.totalorder %s25, 3
      %p309 = por %p307, %p308
      %p310 = scmp.ne.s32.totalorder %s302, %s305
      %p311 = scmp.eq.s32.totalorder %s25, 0
      %p312 = por %p310, %p311
      %p313 = scmp.ne.s32.totalorder %s302, %s305
      %p314 = scmp.eq.s32.totalorder %s30, 3
      %p315 = por %p313, %p314
      %p316 = scmp.ne.s32.totalorder %s305, %s306
      %p317 = scmp.eq.s32.totalorder %s30, 0
      %p318 = por %p316, %p317
      %p319 = scmp.ne.s32.totalorder %s305, %s306
      %p320 = scmp.eq.s32.totalorder %s31, 3
      %p321 = por %p319, %p320
      %p323 = scmp.ne.s32.totalorder %s306, %s322
      %p324 = scmp.eq.s32.totalorder %s31, 0
      %p325 = por %p323, %p324
      %s326 = ssub.s32 %s33, %s40
      %p327 = scmp.eq.s32.totalorder %s326, 0
      %s329 = sadd.s32 %s328, 1
      %s330 = scalar_select %p327, %s328, %s329
      %p333 = pneg %p327
      %p334 = scmp.eq.s32.totalorder %s25, 3
      %p335 = por %p333, %p334
      %p336 = scmp.ne.s32.totalorder %s328, %s331
      %p337 = scmp.eq.s32.totalorder %s25, 0
      %p338 = por %p336, %p337
      %p339 = scmp.ne.s32.totalorder %s328, %s331
      %p340 = scmp.eq.s32.totalorder %s30, 3
      %p341 = por %p339, %p340
      %p342 = scmp.ne.s32.totalorder %s331, %s332
      %p343 = scmp.eq.s32.totalorder %s30, 0
      %p344 = por %p342, %p343
      %p345 = scmp.ne.s32.totalorder %s331, %s332
      %p346 = scmp.eq.s32.totalorder %s31, 3
      %p347 = por %p345, %p346
      %p349 = scmp.ne.s32.totalorder %s332, %s348
      %p350 = scmp.eq.s32.totalorder %s31, 0
      %p351 = por %p349, %p350
      %s352 = ssub.s32 %s33, %s40
      %p353 = scmp.eq.s32.totalorder %s352, 0
      %s355 = sadd.s32 %s354, 1
      %s356 = scalar_select %p353, %s354, %s355
      %p359 = pneg %p353
      %p360 = scmp.eq.s32.totalorder %s25, 3
      %p361 = por %p359, %p360
      %p362 = scmp.ne.s32.totalorder %s354, %s357
      %p363 = scmp.eq.s32.totalorder %s25, 0
      %p364 = por %p362, %p363
      %p365 = scmp.ne.s32.totalorder %s354, %s357
      %p366 = scmp.eq.s32.totalorder %s30, 3
      %p367 = por %p365, %p366
      %p368 = scmp.ne.s32.totalorder %s357, %s358
      %p369 = scmp.eq.s32.totalorder %s30, 0
      %p370 = por %p368, %p369
      %p371 = scmp.ne.s32.totalorder %s357, %s358
      %p372 = scmp.eq.s32.totalorder %s31, 3
      %p373 = por %p371, %p372
      %p375 = scmp.ne.s32.totalorder %s358, %s374
      %p376 = scmp.eq.s32.totalorder %s31, 0
      %p377 = por %p375, %p376
      %s379 = sadd.s32 %s378, 1
      %p382 = scmp.eq.s32.totalorder %s25, 3
      %p383 = scmp.ne.s32.totalorder %s378, %s380
      %p384 = scmp.eq.s32.totalorder %s25, 0
      %p385 = por %p383, %p384
      %p386 = scmp.ne.s32.totalorder %s378, %s380
      %p387 = scmp.eq.s32.totalorder %s30, 3
      %p388 = por %p386, %p387
      %p389 = scmp.ne.s32.totalorder %s380, %s381
      %p390 = scmp.eq.s32.totalorder %s30, 0
      %p391 = por %p389, %p390
      %p392 = scmp.ne.s32.totalorder %s380, %s381
      %p393 = scmp.eq.s32.totalorder %s31, 3
      %p394 = por %p392, %p393
      %p396 = scmp.ne.s32.totalorder %s381, %s395
      %p397 = scmp.eq.s32.totalorder %s31, 0
      %p398 = por %p396, %p397
      %s400 = sadd.s32 %s399, 1
      %p403 = scmp.eq.s32.totalorder %s25, 3
      %p404 = scmp.ne.s32.totalorder %s399, %s401
      %p405 = scmp.eq.s32.totalorder %s25, 0
      %p406 = por %p404, %p405
      %p407 = scmp.ne.s32.totalorder %s399, %s401
      %p408 = scmp.eq.s32.totalorder %s30, 3
      %p409 = por %p407, %p408
      %p410 = scmp.ne.s32.totalorder %s401, %s402
      %p411 = scmp.eq.s32.totalorder %s30, 0
      %p412 = por %p410, %p411
      %p413 = scmp.ne.s32.totalorder %s401, %s402
      %p414 = scmp.eq.s32.totalorder %s31, 3
      %p415 = por %p413, %p414
      %p417 = scmp.ne.s32.totalorder %s402, %s416
      %p418 = scmp.eq.s32.totalorder %s31, 0
      %p419 = por %p417, %p418
      %s421 = sadd.s32 %s420, 1
      %p424 = scmp.eq.s32.totalorder %s25, 3
      %p425 = scmp.ne.s32.totalorder %s420, %s422
      %p426 = scmp.eq.s32.totalorder %s25, 0
      %p427 = por %p425, %p426
      %p428 = scmp.ne.s32.totalorder %s420, %s422
      %p429 = scmp.eq.s32.totalorder %s30, 3
      %p430 = por %p428, %p429
      %p431 = scmp.ne.s32.totalorder %s422, %s423
      %p432 = scmp.eq.s32.totalorder %s30, 0
      %p433 = por %p431, %p432
      %p434 = scmp.ne.s32.totalorder %s422, %s423
      %p435 = scmp.eq.s32.totalorder %s31, 3
      %p436 = por %p434, %p435
      %p438 = scmp.ne.s32.totalorder %s423, %s437
      %p439 = scmp.eq.s32.totalorder %s31, 0
      %p440 = por %p438, %p439
      %s441 = ssub.s32 %s32, %s44
      %p442 = scmp.eq.s32.totalorder %s441, 0
      %s444 = sadd.s32 %s443, 1
      %s445 = scalar_select %p442, %s443, %s444
      %p448 = pneg %p442
      %p449 = scmp.eq.s32.totalorder %s25, 3
      %p450 = por %p448, %p449
      %p451 = scmp.ne.s32.totalorder %s443, %s446
      %p452 = scmp.eq.s32.totalorder %s25, 0
      %p453 = por %p451, %p452
      %p454 = scmp.ne.s32.totalorder %s443, %s446
      %p455 = scmp.eq.s32.totalorder %s30, 3
      %p456 = por %p454, %p455
      %p457 = scmp.ne.s32.totalorder %s446, %s447
      %p458 = scmp.eq.s32.totalorder %s30, 0
      %p459 = por %p457, %p458
      %p460 = scmp.ne.s32.totalorder %s446, %s447
      %p461 = scmp.eq.s32.totalorder %s31, 3
      %p462 = por %p460, %p461
      %p464 = scmp.ne.s32.totalorder %s447, %s463
      %p465 = scmp.eq.s32.totalorder %s31, 0
      %p466 = por %p464, %p465
      %p467 = scmp.le.s32.totalorder 1, %s25
      %p468 = scmp.lt.s32.totalorder %s25, 5
      %p469 = pnand %p467, %p468
      %p470 = pneg %p469
      // Predicated region
      $region9: #{tpu_custom_call.1} parent=5 // pred_check
        _
      $region10: #{tpu_custom_call.1} parent=5 // pred_check_branch
        %472 = sbr.rel (%p469) target = $region12
      $region11: #{tpu_custom_call.1} parent=5 // pred_region
        %s473 = ssub.s32 %s25, 1
        // Predicated region
        $region13: #{tpu_custom_call.1} parent=11 // pred_check
          %p474 = pneg %p84
        $region14: #{tpu_custom_call.1} parent=11 // pred_check_branch
          %476 = sbr.rel (%p474) target = $region16
        $region15: #{tpu_custom_call.1} parent=11 // pred_region
          _
        $region16: #{tpu_custom_call.1} parent=11 // pred_fallthru
          _
        // Predicated region
        $region17: #{tpu_custom_call.1} parent=11 // pred_check
          %p477 = pneg %p391
        $region18: #{tpu_custom_call.1} parent=11 // pred_check_branch
          %479 = sbr.rel (%p477) target = $region20
        $region19: #{tpu_custom_call.1} parent=11 // pred_region
          _
        $region20: #{tpu_custom_call.1} parent=11 // pred_fallthru
          _
        // Predicated region
        $region21: #{tpu_custom_call.1} parent=11 // pred_check
          %p480 = pneg %p412
        $region22: #{tpu_custom_call.1} parent=11 // pred_check_branch
          %482 = sbr.rel (%p480) target = $region24
        $region23: #{tpu_custom_call.1} parent=11 // pred_region
          _
        $region24: #{tpu_custom_call.1} parent=11 // pred_fallthru
          _
        // Predicated region
        $region25: #{tpu_custom_call.1} parent=11 // pred_check
          %p483 = pneg %p433
        $region26: #{tpu_custom_call.1} parent=11 // pred_check_branch
          %485 = sbr.rel (%p483) target = $region28
        $region27: #{tpu_custom_call.1} parent=11 // pred_region
          _
        $region28: #{tpu_custom_call.1} parent=11 // pred_fallthru
          _
      $region12: #{tpu_custom_call.1} parent=5 // pred_fallthru
        _
      %p486 = scmp.lt.s32.totalorder %s25, 4
      // Predicated region
      $region29: #{tpu_custom_call.1} parent=5 // pred_check
        %p487 = pneg %p486
      $region30: #{tpu_custom_call.1} parent=5 // pred_check_branch
        %489 = sbr.rel (%p487) target = $region32
      $region31: #{tpu_custom_call.1} parent=5 // pred_region
        // Predicated region
        $region33: #{tpu_custom_call.1} parent=31 // pred_check
          %p490 = pneg %p57
        $region34: #{tpu_custom_call.1} parent=31 // pred_check_branch
          %492 = sbr.rel (%p490) target = $region36
        $region35: #{tpu_custom_call.1} parent=31 // pred_region
          %p493 = scmp.lt.s32.totalorder %s32, 1
          %s494 = scalar_select %p493, %s32, 1
          %s495 = smul.addr %s494, 8
          %s496 = scalar_lea.vmem %s0, %s495
        $region36: #{tpu_custom_call.1} parent=31 // pred_fallthru
          _
        // Predicated region
        $region37: #{tpu_custom_call.1} parent=31 // pred_check
          %p497 = pneg %p104
        $region38: #{tpu_custom_call.1} parent=31 // pred_check_branch
          %499 = sbr.rel (%p497) target = $region40
        $region39: #{tpu_custom_call.1} parent=31 // pred_region
          %p500 = scmp.lt.s32.totalorder %s33, 1
          %s501 = scalar_select %p500, %s33, 1
          %s502 = scalar_lea.vmem %s2, %s501
        $region40: #{tpu_custom_call.1} parent=31 // pred_fallthru
          _
        // Predicated region
        $region41: #{tpu_custom_call.1} parent=31 // pred_check
          %p503 = pneg %p130
        $region42: #{tpu_custom_call.1} parent=31 // pred_check_branch
          %505 = sbr.rel (%p503) target = $region44
        $region43: #{tpu_custom_call.1} parent=31 // pred_region
          %p506 = scmp.lt.s32.totalorder %s33, 1
          %s507 = scalar_select %p506, %s33, 1
          %s508 = scalar_lea.vmem %s3, %s507
        $region44: #{tpu_custom_call.1} parent=31 // pred_fallthru
          _
        // Predicated region
        $region45: #{tpu_custom_call.1} parent=31 // pred_check
          %p509 = pneg %p156
        $region46: #{tpu_custom_call.1} parent=31 // pred_check_branch
          %511 = sbr.rel (%p509) target = $region48
        $region47: #{tpu_custom_call.1} parent=31 // pred_region
          %p512 = scmp.lt.s32.totalorder %s33, 1
          %s513 = scalar_select %p512, %s33, 1
          %s514 = smul.addr %s513, 4
          %s515 = smul.addr %s514, 8
          %s516 = scalar_lea.vmem %s4, %s515
        $region48: #{tpu_custom_call.1} parent=31 // pred_fallthru
          _
        // Predicated region
        $region49: #{tpu_custom_call.1} parent=31 // pred_check
          %p517 = pneg %p182
        $region50: #{tpu_custom_call.1} parent=31 // pred_check_branch
          %519 = sbr.rel (%p517) target = $region52
        $region51: #{tpu_custom_call.1} parent=31 // pred_region
          %p520 = scmp.lt.s32.totalorder %s33, 1
          %s521 = scalar_select %p520, %s33, 1
          %s522 = smul.addr %s521, 4
          %s523 = smul.addr %s522, 8
          %s524 = scalar_lea.vmem %s5, %s523
        $region52: #{tpu_custom_call.1} parent=31 // pred_fallthru
          _
        // Predicated region
        $region53: #{tpu_custom_call.1} parent=31 // pred_check
          %p525 = pneg %p208
        $region54: #{tpu_custom_call.1} parent=31 // pred_check_branch
          %527 = sbr.rel (%p525) target = $region56
        $region55: #{tpu_custom_call.1} parent=31 // pred_region
          %p528 = scmp.lt.s32.totalorder %s33, 1
          %s529 = scalar_select %p528, %s33, 1
          %s530 = scalar_lea.vmem %s6, %s529
        $region56: #{tpu_custom_call.1} parent=31 // pred_fallthru
          _
        // Predicated region
        $region57: #{tpu_custom_call.1} parent=31 // pred_check
          %p531 = pneg %p234
        $region58: #{tpu_custom_call.1} parent=31 // pred_check_branch
          %533 = sbr.rel (%p531) target = $region60
        $region59: #{tpu_custom_call.1} parent=31 // pred_region
          %p534 = scmp.lt.s32.totalorder %s33, 1
          %s535 = scalar_select %p534, %s33, 1
          %s536 = scalar_lea.vmem %s7, %s535
        $region60: #{tpu_custom_call.1} parent=31 // pred_fallthru
          _
        // Predicated region
        $region61: #{tpu_custom_call.1} parent=31 // pred_check
          %p537 = pneg %p260
        $region62: #{tpu_custom_call.1} parent=31 // pred_check_branch
          %539 = sbr.rel (%p537) target = $region64
        $region63: #{tpu_custom_call.1} parent=31 // pred_region
          %p540 = scmp.lt.s32.totalorder %s33, 1
          %s541 = scalar_select %p540, %s33, 1
          %s542 = scalar_lea.vmem %s8, %s541
        $region64: #{tpu_custom_call.1} parent=31 // pred_fallthru
          _
        // Predicated region
        $region65: #{tpu_custom_call.1} parent=31 // pred_check
          %p543 = pneg %p286
        $region66: #{tpu_custom_call.1} parent=31 // pred_check_branch
          %545 = sbr.rel (%p543) target = $region68
        $region67: #{tpu_custom_call.1} parent=31 // pred_region
          %p546 = scmp.lt.s32.totalorder %s33, 1
          %s547 = scalar_select %p546, %s33, 1
          %s548 = smul.addr %s547, 4
          %s549 = smul.addr %s548, 8
          %s550 = scalar_lea.vmem %s9, %s549
        $region68: #{tpu_custom_call.1} parent=31 // pred_fallthru
          _
        // Predicated region
        $region69: #{tpu_custom_call.1} parent=31 // pred_check
          %p551 = pneg %p312
        $region70: #{tpu_custom_call.1} parent=31 // pred_check_branch
          %553 = sbr.rel (%p551) target = $region72
        $region71: #{tpu_custom_call.1} parent=31 // pred_region
          %p554 = scmp.lt.s32.totalorder %s33, 1
          %s555 = scalar_select %p554, %s33, 1
          %s556 = scalar_lea.vmem %s10, %s555
        $region72: #{tpu_custom_call.1} parent=31 // pred_fallthru
          _
        // Predicated region
        $region73: #{tpu_custom_call.1} parent=31 // pred_check
          %p557 = pneg %p338
        $region74: #{tpu_custom_call.1} parent=31 // pred_check_branch
          %559 = sbr.rel (%p557) target = $region76
        $region75: #{tpu_custom_call.1} parent=31 // pred_region
          %p560 = scmp.lt.s32.totalorder %s33, 1
          %s561 = scalar_select %p560, %s33, 1
          %s562 = smul.addr %s561, 16
          %s563 = smul.addr %s562, 8
          %s564 = scalar_lea.vmem %s11, %s563
        $region76: #{tpu_custom_call.1} parent=31 // pred_fallthru
          _
        // Predicated region
        $region77: #{tpu_custom_call.1} parent=31 // pred_check
          %p565 = pneg %p364
        $region78: #{tpu_custom_call.1} parent=31 // pred_check_branch
          %567 = sbr.rel (%p565) target = $region80
        $region79: #{tpu_custom_call.1} parent=31 // pred_region
          %p568 = scmp.lt.s32.totalorder %s33, 1
          %s569 = scalar_select %p568, %s33, 1
          %s570 = scalar_lea.vmem %s12, %s569
        $region80: #{tpu_custom_call.1} parent=31 // pred_fallthru
          _
      $region32: #{tpu_custom_call.1} parent=5 // pred_fallthru
        _
      %p571 = scmp.le.s32.totalorder 1, %s25
      %p572 = scmp.lt.s32.totalorder %s25, 5
      %p573 = pnand %p571, %p572
      %p574 = pneg %p573
      // Predicated region
      $region81: #{tpu_custom_call.1} parent=5 // pred_check
        _
      $region82: #{tpu_custom_call.1} parent=5 // pred_check_branch
        %576 = sbr.rel (%p573) target = $region84
      $region83: #{tpu_custom_call.1} parent=5 // pred_region
        %s577 = ssub.s32 %s25, 1
        %p578 = scmp.lt.s32.totalorder %s34, 1
        %s579 = scalar_select %p578, %s34, 1
        %s580 = smul.addr %s579, 8
        %s581 = scalar_lea.vmem %s0, %s580
        %p582 = pneg %p63
        %p583 = pneg %p60
        %p584 = pneg %p84
        %p585 = pneg %p81
        %p586 = scmp.lt.s32.totalorder %s35, 1
        %s587 = scalar_select %p586, %s35, 1
        %s588 = scalar_lea.vmem %s2, %s587
        %p589 = pneg %p110
        %p590 = pneg %p107
        %p591 = scmp.lt.s32.totalorder %s35, 1
        %s592 = scalar_select %p591, %s35, 1
        %s593 = scalar_lea.vmem %s3, %s592
        %p594 = pneg %p136
        %p595 = pneg %p133
        %p596 = scmp.lt.s32.totalorder %s35, 1
        %s597 = scalar_select %p596, %s35, 1
        %s598 = smul.addr %s597, 4
        %s599 = smul.addr %s598, 8
        %s600 = scalar_lea.vmem %s4, %s599
        %p601 = pneg %p162
        %p602 = pneg %p159
        %p603 = scmp.lt.s32.totalorder %s35, 1
        %s604 = scalar_select %p603, %s35, 1
        %s605 = smul.addr %s604, 4
        %s606 = smul.addr %s605, 8
        %s607 = scalar_lea.vmem %s5, %s606
        %p608 = pneg %p188
        %p609 = pneg %p185
        %p610 = scmp.lt.s32.totalorder %s35, 1
        %s611 = scalar_select %p610, %s35, 1
        %s612 = scalar_lea.vmem %s6, %s611
        %p613 = pneg %p214
        %p614 = pneg %p211
        %p615 = scmp.lt.s32.totalorder %s35, 1
        %s616 = scalar_select %p615, %s35, 1
        %s617 = scalar_lea.vmem %s7, %s616
        %p618 = pneg %p240
        %p619 = pneg %p237
        %p620 = scmp.lt.s32.totalorder %s35, 1
        %s621 = scalar_select %p620, %s35, 1
        %s622 = scalar_lea.vmem %s8, %s621
        %p623 = pneg %p266
        %p624 = pneg %p263
        %p625 = scmp.lt.s32.totalorder %s35, 1
        %s626 = scalar_select %p625, %s35, 1
        %s627 = smul.addr %s626, 4
        %s628 = smul.addr %s627, 8
        %s629 = scalar_lea.vmem %s9, %s628
        %p630 = pneg %p292
        %p631 = pneg %p289
        %p632 = scmp.lt.s32.totalorder %s35, 1
        %s633 = scalar_select %p632, %s35, 1
        %s634 = scalar_lea.vmem %s10, %s633
        %p635 = pneg %p318
        %p636 = pneg %p315
        %p637 = scmp.lt.s32.totalorder %s35, 1
        %s638 = scalar_select %p637, %s35, 1
        %s639 = smul.addr %s638, 16
        %s640 = smul.addr %s639, 8
        %s641 = scalar_lea.vmem %s11, %s640
        %p642 = pneg %p344
        %p643 = pneg %p341
        %p644 = scmp.lt.s32.totalorder %s35, 1
        %s645 = scalar_select %p644, %s35, 1
        %s646 = scalar_lea.vmem %s12, %s645
        %p647 = pneg %p370
        %p648 = pneg %p367
        %p649 = pneg %p391
        %p650 = pneg %p388
        %p651 = pneg %p412
        %p652 = pneg %p409
        %p653 = pneg %p433
        %p654 = pneg %p430
        %p655 = pneg %p459
        %p656 = pneg %p456
        %s657 = sand.u32 %s446, 1
        %s658 = scalar_lea.sflag [#allocation4], %s657
        %s659 = sand.u32 %s446, 1
        %s660 = smul.addr %s659, 16
        %s661 = scalar_lea.vmem [#allocation3], %s660
        %p662 = scmp.lt.s32.totalorder %s34, 1
        %s663 = scalar_select %p662, %s34, 1
        %s664 = smul.addr %s663, 8
        %s665 = scalar_lea.vmem %s0, %s664
        %p666 = scmp.lt.s32.totalorder %s35, 1
        %s667 = scalar_select %p666, %s35, 1
        %s668 = scalar_lea.vmem %s2, %s667
        %p669 = scmp.lt.s32.totalorder %s35, 1
        %s670 = scalar_select %p669, %s35, 1
        %s671 = scalar_lea.vmem %s3, %s670
        %p672 = scmp.lt.s32.totalorder %s35, 1
        %s673 = scalar_select %p672, %s35, 1
        %s674 = smul.addr %s673, 4
        %s675 = smul.addr %s674, 8
        %s676 = scalar_lea.vmem %s4, %s675
        %p677 = scmp.lt.s32.totalorder %s35, 1
        %s678 = scalar_select %p677, %s35, 1
        %s679 = smul.addr %s678, 4
        %s680 = smul.addr %s679, 8
        %s681 = scalar_lea.vmem %s5, %s680
        %p682 = scmp.lt.s32.totalorder %s35, 1
        %s683 = scalar_select %p682, %s35, 1
        %s684 = scalar_lea.vmem %s6, %s683
        %p685 = scmp.lt.s32.totalorder %s35, 1
        %s686 = scalar_select %p685, %s35, 1
        %s687 = scalar_lea.vmem %s7, %s686
        %p688 = scmp.lt.s32.totalorder %s35, 1
        %s689 = scalar_select %p688, %s35, 1
        %s690 = scalar_lea.vmem %s8, %s689
        %p691 = scmp.lt.s32.totalorder %s35, 1
        %s692 = scalar_select %p691, %s35, 1
        %s693 = smul.addr %s692, 4
        %s694 = smul.addr %s693, 8
        %s695 = scalar_lea.vmem %s9, %s694
        %p696 = scmp.lt.s32.totalorder %s35, 1
        %s697 = scalar_select %p696, %s35, 1
        %s698 = scalar_lea.vmem %s10, %s697
        %p699 = scmp.lt.s32.totalorder %s35, 1
        %s700 = scalar_select %p699, %s35, 1
        %s701 = smul.addr %s700, 16
        %s702 = smul.addr %s701, 8
        %s703 = scalar_lea.vmem %s11, %s702
        %p704 = scmp.lt.s32.totalorder %s35, 1
        %s705 = scalar_select %p704, %s35, 1
        %s706 = scalar_lea.vmem %s12, %s705
        %p707 = scmp.eq.s32.totalorder %s35, 0
        // Predicated region
        $region85: #{tpu_custom_call.1} parent=83 // pred_check
          %p708 = pneg %p707
        $region86: #{tpu_custom_call.1} parent=83 // pred_check_branch
          %710 = sbr.rel (%p708) target = $region88
        $region87: #{tpu_custom_call.1} parent=83 // pred_region
          %v711 = vld [vmem:[%s665] sm:$0xff]
          %vm712 = vcmask 261120
          %713 = vst.msk [vmem:[#allocation2] sm:$0xff] %vm712, %v711
        $region88: #{tpu_custom_call.1} parent=83 // pred_fallthru
          _
        %v714 = vld [vmem:[#allocation2] sm:$0xff]
        %v715 = vld [vmem:[%s1] sm:$0xff]
        %v716 = vld [vmem:[%s668] sm:$0x1]
        %v717 = vld [vmem:[%s671] sm:$0x1]
        %vm718 = vcmask 261120
        %v719 = vsel %vm718, %v714, 0.0
        %720 = vadd.xlane.f32.xlu0 %v719
        %v721 = vpop.xlane.xlu0 %720
        %v722 = vrcp.pop 32.0
        %v723 = vmul.f32 %v721, %v722
        %v724 = vsub.f32 %v714, %v723
        %v725 = vmul.f32 %v724, %v724
        %v726 = vsel %vm718, %v725, 0.0
        %727 = vadd.xlane.f32.xlu0 %v726
        %v728 = vpop.xlane.xlu0 %727
        %v729 = vmul.f32 %v728, %v722
        %v730 = vadd.f32 %v729, 1e-05
        %v731 = vrsqrt.pop %v730
        %v732 = vmul.f32 %v730, %v731
        %vm733 = vcmp.eq.f32.partialorder %v730, inf
        %v734 = vsel %vm733, %v730, %v732
        %vm735 = vcmp.eq.f32.partialorder %v730, 0.0
        %v736 = vand.u32 %v730, 2147483648
        %v737 = vsel %vm735, %v736, %v734
        %v738 = vrcp.pop %v737
        %v739 = vmul.f32 %v724, %v738
        %v741 = vlaneseq
        %v742 = vshrl.u32 %v741, 7
        %v743 = vsub.s32 0, %v742
        %v744 = vrot.slane %v716, %v743
        %v746 = vmul.f32 %v744, %v739
        %v748 = vlaneseq
        %v749 = vshrl.u32 %v748, 7
        %v750 = vsub.s32 0, %v749
        %v751 = vrot.slane %v717, %v750
        %v753 = vadd.f32 %v746, %v751
        %v754 = vld [vmem:[%s676] sm:$0xff]
        %v755 = vld [vmem:[%s676 + $0x8] sm:$0xff]
        %v756 = vld [vmem:[%s676 + $0x10] sm:$0xff]
        %v757 = vld [vmem:[%s676 + $0x18] sm:$0xff]
        %v759 = vsel %vm718, %v753, 0
        %761 = vmatprep.subr.mxu0 0.0
        %762 = vmatpush1.msra.mxu0 %v754
        %763 = vmatprep.subr.mxu0 0.0
        %764 = vmatpush1.msra.mxu0 %v755
        %765 = vmatprep.subr.mxu0 0.0
        %766 = vmatpush1.msra.mxu0 %v756
        %767 = vmatprep.subr.mxu0 0.0
        %768 = vmatpush1.msra.mxu0 %v757
        %769 = vmatprep.subr.mxu0 0.0
        %770 = vmatpush1.msra.mxu0 0.0
        %771 = vmatprep.subr.mxu0 0.0
        %772 = vmatpush1.msra.mxu0 0.0
        %773 = vmatprep.subr.mxu0 0.0
        %774 = vmatpush1.msra.mxu0 0.0
        %775 = vmatprep.subr.mxu0 0.0
        %776 = vmatpush1.msra.mxu0 0.0
        %777 = vmatprep.subr.mxu0 0.0
        %778 = vmatpush1.msra.mxu0 0.0
        %779 = vmatprep.subr.mxu0 0.0
        %780 = vmatpush1.msra.mxu0 0.0
        %781 = vmatprep.subr.mxu0 0.0
        %782 = vmatpush1.msra.mxu0 0.0
        %783 = vmatprep.subr.mxu0 0.0
        %784 = vmatpush1.msra.mxu0 0.0
        %785 = vmatprep.subr.mxu0 0.0
        %786 = vmatpush1.msra.mxu0 0.0
        %787 = vmatprep.subr.mxu0 0.0
        %788 = vmatpush1.msra.mxu0 0.0
        %789 = vmatprep.subr.mxu0 0.0
        %790 = vmatpush1.msra.mxu0 0.0
        %791 = vmatprep.subr.mxu0 0.0
        %792 = vmatpush1.msra.mxu0 0.0
        %793 = vmatprep.subr.mxu0 0.0
        %794 = vmatpush1.msra.mxu0 0.0
        %795 = vmatprep.subr.mxu0 0.0
        %796 = vmatpush1.msra.mxu0 0.0
        %797 = vmatprep.subr.mxu0 0.0
        %798 = vmatpush1.msra.mxu0 0.0
        %799 = vmatprep.subr.mxu0 0.0
        %800 = vmatpush1.msra.mxu0 0.0
        %801 = vmatprep.subr.mxu0 0.0
        %802 = vmatpush1.msra.mxu0 0.0
        %803 = vmatprep.subr.mxu0 0.0
        %804 = vmatpush1.msra.mxu0 0.0
        %805 = vmatprep.subr.mxu0 0.0
        %806 = vmatpush1.msra.mxu0 0.0
        %807 = vmatprep.subr.mxu0 0.0
        %808 = vmatpush1.msra.mxu0 0.0
        %809 = vmatprep.subr.mxu0 0.0
        %810 = vmatpush1.msra.mxu0 0.0
        %811 = vmatprep.subr.mxu0 0.0
        %812 = vmatpush1.msra.mxu0 0.0
        %813 = vmatprep.subr.mxu0 0.0
        %814 = vmatpush1.msra.mxu0 0.0
        %815 = vmatprep.subr.mxu0 0.0
        %816 = vmatpush1.msra.mxu0 0.0
        %817 = vmatprep.subr.mxu0 0.0
        %818 = vmatpush1.msra.mxu0 0.0
        %819 = vmatprep.subr.mxu0 0.0
        %820 = vmatpush1.msra.mxu0 0.0
        %821 = vmatprep.subr.mxu0 0.0
        %822 = vmatpush1.msra.mxu0 0.0
        %823 = vmatprep.subr.mxu0 0.0
        %824 = vmatpush1.msra.mxu0 0.0
        %825 = vmatprep.mubr.f32.mxu0 0.0
        %826 = vmatmul.mubr.f32.gmra.mrb[0].mxu0 %v759
        %v827 = vpop.f32.mrb[0].mxu0
        %v828 = vadd.f32 0.0, %v827
        %v829 = vpop.f32.mrb[0].mxu0
        %830 = vdwg.mxu0
        %v831 = vmul.f32 %v828, 0.35355338
        %833 = vrot.lane.b32.xlu0 %v831, 120
        %v834 = vpop.permute.xlu0 %833
        %835 = vrot.lane.b32.xlu0 %v831, 112
        %v836 = vpop.permute.xlu0 %835
        %837 = vrot.lane.b32.xlu0 %v831, 104
        %v838 = vpop.permute.xlu0 %837
        %840 = vrot.lane.b32.xlu0 %v828, 120
        %v841 = vpop.permute.xlu0 %840
        %842 = vrot.lane.b32.xlu0 %v828, 112
        %v843 = vpop.permute.xlu0 %842
        %844 = vrot.lane.b32.xlu0 %v828, 104
        %v845 = vpop.permute.xlu0 %844
        %846 = vrot.lane.b32.xlu0 %v828, 96
        %v847 = vpop.permute.xlu0 %846
        %vm848 = vcmask 64512
        %v849 = vsel %vm848, %v831, 0
        %v851 = vsel %vm848, %v847, 0
        %853 = vmatprep.subr.mxu0 0.0
        %854 = vmatpush1.xpose.msra.mxu0 %v851
        %855 = vmatprep.subr.mxu0 0.0
        %856 = vmatpush1.xpose.msra.mxu0 0.0
        %857 = vmatprep.subr.mxu0 0.0
        %858 = vmatpush1.xpose.msra.mxu0 0.0
        %859 = vmatprep.subr.mxu0 0.0
        %860 = vmatpush1.xpose.msra.mxu0 0.0
        %861 = vmatprep.subr.mxu0 0.0
        %862 = vmatpush1.xpose.msra.mxu0 0.0
        %863 = vmatprep.subr.mxu0 0.0
        %864 = vmatpush1.xpose.msra.mxu0 0.0
        %865 = vmatprep.subr.mxu0 0.0
        %866 = vmatpush1.xpose.msra.mxu0 0.0
        %867 = vmatprep.subr.mxu0 0.0
        %868 = vmatpush1.xpose.msra.mxu0 0.0
        %869 = vmatprep.subr.mxu0 0.0
        %870 = vmatpush1.xpose.msra.mxu0 0.0
        %871 = vmatprep.subr.mxu0 0.0
        %872 = vmatpush1.xpose.msra.mxu0 0.0
        %873 = vmatprep.subr.mxu0 0.0
        %874 = vmatpush1.xpose.msra.mxu0 0.0
        %875 = vmatprep.subr.mxu0 0.0
        %876 = vmatpush1.xpose.msra.mxu0 0.0
        %877 = vmatprep.subr.mxu0 0.0
        %878 = vmatpush1.xpose.msra.mxu0 0.0
        %879 = vmatprep.subr.mxu0 0.0
        %880 = vmatpush1.xpose.msra.mxu0 0.0
        %881 = vmatprep.subr.mxu0 0.0
        %882 = vmatpush1.xpose.msra.mxu0 0.0
        %883 = vmatprep.subr.mxu0 0.0
        %884 = vmatpush1.xpose.msra.mxu0 0.0
        %885 = vmatprep.subr.mxu0 0.0
        %886 = vmatpush1.xpose.msra.mxu0 0.0
        %887 = vmatprep.subr.mxu0 0.0
        %888 = vmatpush1.xpose.msra.mxu0 0.0
        %889 = vmatprep.subr.mxu0 0.0
        %890 = vmatpush1.xpose.msra.mxu0 0.0
        %891 = vmatprep.subr.mxu0 0.0
        %892 = vmatpush1.xpose.msra.mxu0 0.0
        %893 = vmatprep.subr.mxu0 0.0
        %894 = vmatpush1.xpose.msra.mxu0 0.0
        %895 = vmatprep.subr.mxu0 0.0
        %896 = vmatpush1.xpose.msra.mxu0 0.0
        %897 = vmatprep.subr.mxu0 0.0
        %898 = vmatpush1.xpose.msra.mxu0 0.0
        %899 = vmatprep.subr.mxu0 0.0
        %900 = vmatpush1.xpose.msra.mxu0 0.0
        %901 = vmatprep.subr.mxu0 0.0
        %902 = vmatpush1.xpose.msra.mxu0 0.0
        %903 = vmatprep.subr.mxu0 0.0
        %904 = vmatpush1.xpose.msra.mxu0 0.0
        %905 = vmatprep.subr.mxu0 0.0
        %906 = vmatpush1.xpose.msra.mxu0 0.0
        %907 = vmatprep.subr.mxu0 0.0
        %908 = vmatpush1.xpose.msra.mxu0 0.0
        %909 = vmatprep.subr.mxu0 0.0
        %910 = vmatpush1.xpose.msra.mxu0 0.0
        %911 = vmatprep.subr.mxu0 0.0
        %912 = vmatpush1.xpose.msra.mxu0 0.0
        %913 = vmatprep.subr.mxu0 0.0
        %914 = vmatpush1.xpose.msra.mxu0 0.0
        %915 = vmatprep.subr.mxu0 0.0
        %916 = vmatpush1.xpose.msra.mxu0 0.0
        %917 = vmatprep.mubr.f32.mxu0 0.0
        %918 = vmatmul.mubr.f32.gmra.mrb[0].mxu0 %v849
        %v919 = vpop.f32.mrb[0].mxu0
        %v920 = vadd.f32 %v715, %v919
        %v921 = vpop.f32.mrb[0].mxu0
        %922 = vdwg.mxu0
        %923 = vrot.lane.b32.xlu0 %v841, 96
        %v924 = vpop.permute.xlu0 %923
        %v925 = vsel %vm848, %v834, 0
        %v927 = vsel %vm848, %v924, 0
        %929 = vmatprep.subr.mxu0 0.0
        %930 = vmatpush1.xpose.msra.mxu0 %v927
        %931 = vmatprep.subr.mxu0 0.0
        %932 = vmatpush1.xpose.msra.mxu0 0.0
        %933 = vmatprep.subr.mxu0 0.0
        %934 = vmatpush1.xpose.msra.mxu0 0.0
        %935 = vmatprep.subr.mxu0 0.0
        %936 = vmatpush1.xpose.msra.mxu0 0.0
        %937 = vmatprep.subr.mxu0 0.0
        %938 = vmatpush1.xpose.msra.mxu0 0.0
        %939 = vmatprep.subr.mxu0 0.0
        %940 = vmatpush1.xpose.msra.mxu0 0.0
        %941 = vmatprep.subr.mxu0 0.0
        %942 = vmatpush1.xpose.msra.mxu0 0.0
        %943 = vmatprep.subr.mxu0 0.0
        %944 = vmatpush1.xpose.msra.mxu0 0.0
        %945 = vmatprep.subr.mxu0 0.0
        %946 = vmatpush1.xpose.msra.mxu0 0.0
        %947 = vmatprep.subr.mxu0 0.0
        %948 = vmatpush1.xpose.msra.mxu0 0.0
        %949 = vmatprep.subr.mxu0 0.0
        %950 = vmatpush1.xpose.msra.mxu0 0.0
        %951 = vmatprep.subr.mxu0 0.0
        %952 = vmatpush1.xpose.msra.mxu0 0.0
        %953 = vmatprep.subr.mxu0 0.0
        %954 = vmatpush1.xpose.msra.mxu0 0.0
        %955 = vmatprep.subr.mxu0 0.0
        %956 = vmatpush1.xpose.msra.mxu0 0.0
        %957 = vmatprep.subr.mxu0 0.0
        %958 = vmatpush1.xpose.msra.mxu0 0.0
        %959 = vmatprep.subr.mxu0 0.0
        %960 = vmatpush1.xpose.msra.mxu0 0.0
        %961 = vmatprep.subr.mxu0 0.0
        %962 = vmatpush1.xpose.msra.mxu0 0.0
        %963 = vmatprep.subr.mxu0 0.0
        %964 = vmatpush1.xpose.msra.mxu0 0.0
        %965 = vmatprep.subr.mxu0 0.0
        %966 = vmatpush1.xpose.msra.mxu0 0.0
        %967 = vmatprep.subr.mxu0 0.0
        %968 = vmatpush1.xpose.msra.mxu0 0.0
        %969 = vmatprep.subr.mxu0 0.0
        %970 = vmatpush1.xpose.msra.mxu0 0.0
        %971 = vmatprep.subr.mxu0 0.0
        %972 = vmatpush1.xpose.msra.mxu0 0.0
        %973 = vmatprep.subr.mxu0 0.0
        %974 = vmatpush1.xpose.msra.mxu0 0.0
        %975 = vmatprep.subr.mxu0 0.0
        %976 = vmatpush1.xpose.msra.mxu0 0.0
        %977 = vmatprep.subr.mxu0 0.0
        %978 = vmatpush1.xpose.msra.mxu0 0.0
        %979 = vmatprep.subr.mxu0 0.0
        %980 = vmatpush1.xpose.msra.mxu0 0.0
        %981 = vmatprep.subr.mxu0 0.0
        %982 = vmatpush1.xpose.msra.mxu0 0.0
        %983 = vmatprep.subr.mxu0 0.0
        %984 = vmatpush1.xpose.msra.mxu0 0.0
        %985 = vmatprep.subr.mxu0 0.0
        %986 = vmatpush1.xpose.msra.mxu0 0.0
        %987 = vmatprep.subr.mxu0 0.0
        %988 = vmatpush1.xpose.msra.mxu0 0.0
        %989 = vmatprep.subr.mxu0 0.0
        %990 = vmatpush1.xpose.msra.mxu0 0.0
        %991 = vmatprep.subr.mxu0 0.0
        %992 = vmatpush1.xpose.msra.mxu0 0.0
        %993 = vmatprep.mubr.f32.mxu0 0.0
        %994 = vmatmul.mubr.f32.gmra.mrb[0].mxu0 %v925
        %v995 = vpop.f32.mrb[0].mxu0
        %v996 = vadd.f32 %v715, %v995
        %v997 = vpop.f32.mrb[0].mxu0
        %998 = vdwg.mxu0
        %999 = vrot.lane.b32.xlu0 %v843, 96
        %v1000 = vpop.permute.xlu0 %999
        %v1001 = vsel %vm848, %v836, 0
        %v1003 = vsel %vm848, %v1000, 0
        %1005 = vmatprep.subr.mxu0 0.0
        %1006 = vmatpush1.xpose.msra.mxu0 %v1003
        %1007 = vmatprep.subr.mxu0 0.0
        %1008 = vmatpush1.xpose.msra.mxu0 0.0
        %1009 = vmatprep.subr.mxu0 0.0
        %1010 = vmatpush1.xpose.msra.mxu0 0.0
        %1011 = vmatprep.subr.mxu0 0.0
        %1012 = vmatpush1.xpose.msra.mxu0 0.0
        %1013 = vmatprep.subr.mxu0 0.0
        %1014 = vmatpush1.xpose.msra.mxu0 0.0
        %1015 = vmatprep.subr.mxu0 0.0
        %1016 = vmatpush1.xpose.msra.mxu0 0.0
        %1017 = vmatprep.subr.mxu0 0.0
        %1018 = vmatpush1.xpose.msra.mxu0 0.0
        %1019 = vmatprep.subr.mxu0 0.0
        %1020 = vmatpush1.xpose.msra.mxu0 0.0
        %1021 = vmatprep.subr.mxu0 0.0
        %1022 = vmatpush1.xpose.msra.mxu0 0.0
        %1023 = vmatprep.subr.mxu0 0.0
        %1024 = vmatpush1.xpose.msra.mxu0 0.0
        %1025 = vmatprep.subr.mxu0 0.0
        %1026 = vmatpush1.xpose.msra.mxu0 0.0
        %1027 = vmatprep.subr.mxu0 0.0
        %1028 = vmatpush1.xpose.msra.mxu0 0.0
        %1029 = vmatprep.subr.mxu0 0.0
        %1030 = vmatpush1.xpose.msra.mxu0 0.0
        %1031 = vmatprep.subr.mxu0 0.0
        %1032 = vmatpush1.xpose.msra.mxu0 0.0
        %1033 = vmatprep.subr.mxu0 0.0
        %1034 = vmatpush1.xpose.msra.mxu0 0.0
        %1035 = vmatprep.subr.mxu0 0.0
        %1036 = vmatpush1.xpose.msra.mxu0 0.0
        %1037 = vmatprep.subr.mxu0 0.0
        %1038 = vmatpush1.xpose.msra.mxu0 0.0
        %1039 = vmatprep.subr.mxu0 0.0
        %1040 = vmatpush1.xpose.msra.mxu0 0.0
        %1041 = vmatprep.subr.mxu0 0.0
        %1042 = vmatpush1.xpose.msra.mxu0 0.0
        %1043 = vmatprep.subr.mxu0 0.0
        %1044 = vmatpush1.xpose.msra.mxu0 0.0
        %1045 = vmatprep.subr.mxu0 0.0
        %1046 = vmatpush1.xpose.msra.mxu0 0.0
        %1047 = vmatprep.subr.mxu0 0.0
        %1048 = vmatpush1.xpose.msra.mxu0 0.0
        %1049 = vmatprep.subr.mxu0 0.0
        %1050 = vmatpush1.xpose.msra.mxu0 0.0
        %1051 = vmatprep.subr.mxu0 0.0
        %1052 = vmatpush1.xpose.msra.mxu0 0.0
        %1053 = vmatprep.subr.mxu0 0.0
        %1054 = vmatpush1.xpose.msra.mxu0 0.0
        %1055 = vmatprep.subr.mxu0 0.0
        %1056 = vmatpush1.xpose.msra.mxu0 0.0
        %1057 = vmatprep.subr.mxu0 0.0
        %1058 = vmatpush1.xpose.msra.mxu0 0.0
        %1059 = vmatprep.subr.mxu0 0.0
        %1060 = vmatpush1.xpose.msra.mxu0 0.0
        %1061 = vmatprep.subr.mxu0 0.0
        %1062 = vmatpush1.xpose.msra.mxu0 0.0
        %1063 = vmatprep.subr.mxu0 0.0
        %1064 = vmatpush1.xpose.msra.mxu0 0.0
        %1065 = vmatprep.subr.mxu0 0.0
        %1066 = vmatpush1.xpose.msra.mxu0 0.0
        %1067 = vmatprep.subr.mxu0 0.0
        %1068 = vmatpush1.xpose.msra.mxu0 0.0
        %1069 = vmatprep.mubr.f32.mxu0 0.0
        %1070 = vmatmul.mubr.f32.gmra.mrb[0].mxu0 %v1001
        %v1071 = vpop.f32.mrb[0].mxu0
        %v1072 = vadd.f32 %v715, %v1071
        %v1073 = vpop.f32.mrb[0].mxu0
        %1074 = vdwg.mxu0
        %1075 = vrot.lane.b32.xlu0 %v845, 96
        %v1076 = vpop.permute.xlu0 %1075
        %v1077 = vsel %vm848, %v838, 0
        %v1079 = vsel %vm848, %v1076, 0
        %1081 = vmatprep.subr.mxu0 0.0
        %1082 = vmatpush1.xpose.msra.mxu0 %v1079
        %1083 = vmatprep.subr.mxu0 0.0
        %1084 = vmatpush1.xpose.msra.mxu0 0.0
        %1085 = vmatprep.subr.mxu0 0.0
        %1086 = vmatpush1.xpose.msra.mxu0 0.0
        %1087 = vmatprep.subr.mxu0 0.0
        %1088 = vmatpush1.xpose.msra.mxu0 0.0
        %1089 = vmatprep.subr.mxu0 0.0
        %1090 = vmatpush1.xpose.msra.mxu0 0.0
        %1091 = vmatprep.subr.mxu0 0.0
        %1092 = vmatpush1.xpose.msra.mxu0 0.0
        %1093 = vmatprep.subr.mxu0 0.0
        %1094 = vmatpush1.xpose.msra.mxu0 0.0
        %1095 = vmatprep.subr.mxu0 0.0
        %1096 = vmatpush1.xpose.msra.mxu0 0.0
        %1097 = vmatprep.subr.mxu0 0.0
        %1098 = vmatpush1.xpose.msra.mxu0 0.0
        %1099 = vmatprep.subr.mxu0 0.0
        %1100 = vmatpush1.xpose.msra.mxu0 0.0
        %1101 = vmatprep.subr.mxu0 0.0
        %1102 = vmatpush1.xpose.msra.mxu0 0.0
        %1103 = vmatprep.subr.mxu0 0.0
        %1104 = vmatpush1.xpose.msra.mxu0 0.0
        %1105 = vmatprep.subr.mxu0 0.0
        %1106 = vmatpush1.xpose.msra.mxu0 0.0
        %1107 = vmatprep.subr.mxu0 0.0
        %1108 = vmatpush1.xpose.msra.mxu0 0.0
        %1109 = vmatprep.subr.mxu0 0.0
        %1110 = vmatpush1.xpose.msra.mxu0 0.0
        %1111 = vmatprep.subr.mxu0 0.0
        %1112 = vmatpush1.xpose.msra.mxu0 0.0
        %1113 = vmatprep.subr.mxu0 0.0
        %1114 = vmatpush1.xpose.msra.mxu0 0.0
        %1115 = vmatprep.subr.mxu0 0.0
        %1116 = vmatpush1.xpose.msra.mxu0 0.0
        %1117 = vmatprep.subr.mxu0 0.0
        %1118 = vmatpush1.xpose.msra.mxu0 0.0
        %1119 = vmatprep.subr.mxu0 0.0
        %1120 = vmatpush1.xpose.msra.mxu0 0.0
        %1121 = vmatprep.subr.mxu0 0.0
        %1122 = vmatpush1.xpose.msra.mxu0 0.0
        %1123 = vmatprep.subr.mxu0 0.0
        %1124 = vmatpush1.xpose.msra.mxu0 0.0
        %1125 = vmatprep.subr.mxu0 0.0
        %1126 = vmatpush1.xpose.msra.mxu0 0.0
        %1127 = vmatprep.subr.mxu0 0.0
        %1128 = vmatpush1.xpose.msra.mxu0 0.0
        %1129 = vmatprep.subr.mxu0 0.0
        %1130 = vmatpush1.xpose.msra.mxu0 0.0
        %1131 = vmatprep.subr.mxu0 0.0
        %1132 = vmatpush1.xpose.msra.mxu0 0.0
        %1133 = vmatprep.subr.mxu0 0.0
        %1134 = vmatpush1.xpose.msra.mxu0 0.0
        %1135 = vmatprep.subr.mxu0 0.0
        %1136 = vmatpush1.xpose.msra.mxu0 0.0
        %1137 = vmatprep.subr.mxu0 0.0
        %1138 = vmatpush1.xpose.msra.mxu0 0.0
        %1139 = vmatprep.subr.mxu0 0.0
        %1140 = vmatpush1.xpose.msra.mxu0 0.0
        %1141 = vmatprep.subr.mxu0 0.0
        %1142 = vmatpush1.xpose.msra.mxu0 0.0
        %1143 = vmatprep.subr.mxu0 0.0
        %1144 = vmatpush1.xpose.msra.mxu0 0.0
        %1145 = vmatprep.mubr.f32.mxu0 0.0
        %1146 = vmatmul.mubr.f32.gmra.mrb[0].mxu0 %v1077
        %v1147 = vpop.f32.mrb[0].mxu0
        %v1148 = vadd.f32 %v715, %v1147
        %v1149 = vpop.f32.mrb[0].mxu0
        %1150 = vdwg.mxu0
        %v1151 = vsel %vm848, %v920, -inf
        %1152 = vmax.xlane.f32.xlu0 %v1151
        %v1153 = vpop.xlane.xlu0 %1152
        %v1154 = vsel %vm848, %v996, -inf
        %1155 = vmax.xlane.f32.xlu0 %v1154
        %v1156 = vpop.xlane.xlu0 %1155
        %v1157 = vsel %vm848, %v1072, -inf
        %1158 = vmax.xlane.f32.xlu0 %v1157
        %v1159 = vpop.xlane.xlu0 %1158
        %v1160 = vsel %vm848, %v1148, -inf
        %1161 = vmax.xlane.f32.xlu0 %v1160
        %v1162 = vpop.xlane.xlu0 %1161
        %v1163 = vsub.f32 %v920, %v1153
        %v1164 = vsub.f32 %v996, %v1156
        %v1165 = vsub.f32 %v1072, %v1159
        %v1166 = vsub.f32 %v1148, %v1162
        %v1167 = vmul.f32 %v1163, 1.442695
        %v1168 = vpow.pop %v1167
        %v1169 = vmul.f32 %v1164, 1.442695
        %v1170 = vpow.pop %v1169
        %v1171 = vmul.f32 %v1165, 1.442695
        %v1172 = vpow.pop %v1171
        %v1173 = vmul.f32 %v1166, 1.442695
        %v1174 = vpow.pop %v1173
        %v1175 = vsel %vm848, %v1168, 0.0
        %1176 = vadd.xlane.f32.xlu0 %v1175
        %v1177 = vpop.xlane.xlu0 %1176
        %v1178 = vsel %vm848, %v1170, 0.0
        %1179 = vadd.xlane.f32.xlu0 %v1178
        %v1180 = vpop.xlane.xlu0 %1179
        %v1181 = vsel %vm848, %v1172, 0.0
        %1182 = vadd.xlane.f32.xlu0 %v1181
        %v1183 = vpop.xlane.xlu0 %1182
        %v1184 = vsel %vm848, %v1174, 0.0
        %1185 = vadd.xlane.f32.xlu0 %v1184
        %v1186 = vpop.xlane.xlu0 %1185
        %v1187 = vrcp.pop %v1177
        %v1188 = vrcp.pop %v1180
        %v1189 = vrcp.pop %v1183
        %v1190 = vrcp.pop %v1186
        %v1191 = vmul.f32 %v1168, %v1187
        %v1192 = vmul.f32 %v1170, %v1188
        %v1193 = vmul.f32 %v1172, %v1189
        %v1194 = vmul.f32 %v1174, %v1190
        %1195 = vrot.lane.b32.xlu0 %v828, 64
        %v1196 = vpop.permute.xlu0 %1195
        %v1199 = vsel %vm848, %v1191, 0
        %1201 = vmatprep.subr.mxu0 0.0
        %1202 = vmatpush1.msra.mxu0 %v1196
        %1203 = vmatprep.subr.mxu0 0.0
        %1204 = vmatpush1.msra.mxu0 0.0
        %1205 = vmatprep.subr.mxu0 0.0
        %1206 = vmatpush1.msra.mxu0 0.0
        %1207 = vmatprep.subr.mxu0 0.0
        %1208 = vmatpush1.msra.mxu0 0.0
        %1209 = vmatprep.subr.mxu0 0.0
        %1210 = vmatpush1.msra.mxu0 0.0
        %1211 = vmatprep.subr.mxu0 0.0
        %1212 = vmatpush1.msra.mxu0 0.0
        %1213 = vmatprep.subr.mxu0 0.0
        %1214 = vmatpush1.msra.mxu0 0.0
        %1215 = vmatprep.subr.mxu0 0.0
        %1216 = vmatpush1.msra.mxu0 0.0
        %1217 = vmatprep.subr.mxu0 0.0
        %1218 = vmatpush1.msra.mxu0 0.0
        %1219 = vmatprep.subr.mxu0 0.0
        %1220 = vmatpush1.msra.mxu0 0.0
        %1221 = vmatprep.subr.mxu0 0.0
        %1222 = vmatpush1.msra.mxu0 0.0
        %1223 = vmatprep.subr.mxu0 0.0
        %1224 = vmatpush1.msra.mxu0 0.0
        %1225 = vmatprep.subr.mxu0 0.0
        %1226 = vmatpush1.msra.mxu0 0.0
        %1227 = vmatprep.subr.mxu0 0.0
        %1228 = vmatpush1.msra.mxu0 0.0
        %1229 = vmatprep.subr.mxu0 0.0
        %1230 = vmatpush1.msra.mxu0 0.0
        %1231 = vmatprep.subr.mxu0 0.0
        %1232 = vmatpush1.msra.mxu0 0.0
        %1233 = vmatprep.subr.mxu0 0.0
        %1234 = vmatpush1.msra.mxu0 0.0
        %1235 = vmatprep.subr.mxu0 0.0
        %1236 = vmatpush1.msra.mxu0 0.0
        %1237 = vmatprep.subr.mxu0 0.0
        %1238 = vmatpush1.msra.mxu0 0.0
        %1239 = vmatprep.subr.mxu0 0.0
        %1240 = vmatpush1.msra.mxu0 0.0
        %1241 = vmatprep.subr.mxu0 0.0
        %1242 = vmatpush1.msra.mxu0 0.0
        %1243 = vmatprep.subr.mxu0 0.0
        %1244 = vmatpush1.msra.mxu0 0.0
        %1245 = vmatprep.subr.mxu0 0.0
        %1246 = vmatpush1.msra.mxu0 0.0
        %1247 = vmatprep.subr.mxu0 0.0
        %1248 = vmatpush1.msra.mxu0 0.0
        %1249 = vmatprep.subr.mxu0 0.0
        %1250 = vmatpush1.msra.mxu0 0.0
        %1251 = vmatprep.subr.mxu0 0.0
        %1252 = vmatpush1.msra.mxu0 0.0
        %1253 = vmatprep.subr.mxu0 0.0
        %1254 = vmatpush1.msra.mxu0 0.0
        %1255 = vmatprep.subr.mxu0 0.0
        %1256 = vmatpush1.msra.mxu0 0.0
        %1257 = vmatprep.subr.mxu0 0.0
        %1258 = vmatpush1.msra.mxu0 0.0
        %1259 = vmatprep.subr.mxu0 0.0
        %1260 = vmatpush1.msra.mxu0 0.0
        %1261 = vmatprep.subr.mxu0 0.0
        %1262 = vmatpush1.msra.mxu0 0.0
        %1263 = vmatprep.subr.mxu0 0.0
        %1264 = vmatpush1.msra.mxu0 0.0
        %1265 = vmatprep.mubr.f32.mxu0 0.0
        %1266 = vmatmul.mubr.f32.gmra.mrb[0].mxu0 %v1199
        %v1267 = vpop.f32.mrb[0].mxu0
        %v1268 = vadd.f32 0.0, %v1267
        %v1269 = vpop.f32.mrb[0].mxu0
        %1270 = vdwg.mxu0
        %1271 = vrot.lane.b32.xlu0 %v841, 64
        %v1272 = vpop.permute.xlu0 %1271
        %v1275 = vsel %vm848, %v1192, 0
        %1277 = vmatprep.subr.mxu0 0.0
        %1278 = vmatpush1.msra.mxu0 %v1272
        %1279 = vmatprep.subr.mxu0 0.0
        %1280 = vmatpush1.msra.mxu0 0.0
        %1281 = vmatprep.subr.mxu0 0.0
        %1282 = vmatpush1.msra.mxu0 0.0
        %1283 = vmatprep.subr.mxu0 0.0
        %1284 = vmatpush1.msra.mxu0 0.0
        %1285 = vmatprep.subr.mxu0 0.0
        %1286 = vmatpush1.msra.mxu0 0.0
        %1287 = vmatprep.subr.mxu0 0.0
        %1288 = vmatpush1.msra.mxu0 0.0
        %1289 = vmatprep.subr.mxu0 0.0
        %1290 = vmatpush1.msra.mxu0 0.0
        %1291 = vmatprep.subr.mxu0 0.0
        %1292 = vmatpush1.msra.mxu0 0.0
        %1293 = vmatprep.subr.mxu0 0.0
        %1294 = vmatpush1.msra.mxu0 0.0
        %1295 = vmatprep.subr.mxu0 0.0
        %1296 = vmatpush1.msra.mxu0 0.0
        %1297 = vmatprep.subr.mxu0 0.0
        %1298 = vmatpush1.msra.mxu0 0.0
        %1299 = vmatprep.subr.mxu0 0.0
        %1300 = vmatpush1.msra.mxu0 0.0
        %1301 = vmatprep.subr.mxu0 0.0
        %1302 = vmatpush1.msra.mxu0 0.0
        %1303 = vmatprep.subr.mxu0 0.0
        %1304 = vmatpush1.msra.mxu0 0.0
        %1305 = vmatprep.subr.mxu0 0.0
        %1306 = vmatpush1.msra.mxu0 0.0
        %1307 = vmatprep.subr.mxu0 0.0
        %1308 = vmatpush1.msra.mxu0 0.0
        %1309 = vmatprep.subr.mxu0 0.0
        %1310 = vmatpush1.msra.mxu0 0.0
        %1311 = vmatprep.subr.mxu0 0.0
        %1312 = vmatpush1.msra.mxu0 0.0
        %1313 = vmatprep.subr.mxu0 0.0
        %1314 = vmatpush1.msra.mxu0 0.0
        %1315 = vmatprep.subr.mxu0 0.0
        %1316 = vmatpush1.msra.mxu0 0.0
        %1317 = vmatprep.subr.mxu0 0.0
        %1318 = vmatpush1.msra.mxu0 0.0
        %1319 = vmatprep.subr.mxu0 0.0
        %1320 = vmatpush1.msra.mxu0 0.0
        %1321 = vmatprep.subr.mxu0 0.0
        %1322 = vmatpush1.msra.mxu0 0.0
        %1323 = vmatprep.subr.mxu0 0.0
        %1324 = vmatpush1.msra.mxu0 0.0
        %1325 = vmatprep.subr.mxu0 0.0
        %1326 = vmatpush1.msra.mxu0 0.0
        %1327 = vmatprep.subr.mxu0 0.0
        %1328 = vmatpush1.msra.mxu0 0.0
        %1329 = vmatprep.subr.mxu0 0.0
        %1330 = vmatpush1.msra.mxu0 0.0
        %1331 = vmatprep.subr.mxu0 0.0
        %1332 = vmatpush1.msra.mxu0 0.0
        %1333 = vmatprep.subr.mxu0 0.0
        %1334 = vmatpush1.msra.mxu0 0.0
        %1335 = vmatprep.subr.mxu0 0.0
        %1336 = vmatpush1.msra.mxu0 0.0
        %1337 = vmatprep.subr.mxu0 0.0
        %1338 = vmatpush1.msra.mxu0 0.0
        %1339 = vmatprep.subr.mxu0 0.0
        %1340 = vmatpush1.msra.mxu0 0.0
        %1341 = vmatprep.mubr.f32.mxu0 0.0
        %1342 = vmatmul.mubr.f32.gmra.mrb[0].mxu0 %v1275
        %v1343 = vpop.f32.mrb[0].mxu0
        %v1344 = vadd.f32 0.0, %v1343
        %v1345 = vpop.f32.mrb[0].mxu0
        %1346 = vdwg.mxu0
        %1347 = vrot.lane.b32.xlu0 %v843, 64
        %v1348 = vpop.permute.xlu0 %1347
        %v1351 = vsel %vm848, %v1193, 0
        %1353 = vmatprep.subr.mxu0 0.0
        %1354 = vmatpush1.msra.mxu0 %v1348
        %1355 = vmatprep.subr.mxu0 0.0
        %1356 = vmatpush1.msra.mxu0 0.0
        %1357 = vmatprep.subr.mxu0 0.0
        %1358 = vmatpush1.msra.mxu0 0.0
        %1359 = vmatprep.subr.mxu0 0.0
        %1360 = vmatpush1.msra.mxu0 0.0
        %1361 = vmatprep.subr.mxu0 0.0
        %1362 = vmatpush1.msra.mxu0 0.0
        %1363 = vmatprep.subr.mxu0 0.0
        %1364 = vmatpush1.msra.mxu0 0.0
        %1365 = vmatprep.subr.mxu0 0.0
        %1366 = vmatpush1.msra.mxu0 0.0
        %1367 = vmatprep.subr.mxu0 0.0
        %1368 = vmatpush1.msra.mxu0 0.0
        %1369 = vmatprep.subr.mxu0 0.0
        %1370 = vmatpush1.msra.mxu0 0.0
        %1371 = vmatprep.subr.mxu0 0.0
        %1372 = vmatpush1.msra.mxu0 0.0
        %1373 = vmatprep.subr.mxu0 0.0
        %1374 = vmatpush1.msra.mxu0 0.0
        %1375 = vmatprep.subr.mxu0 0.0
        %1376 = vmatpush1.msra.mxu0 0.0
        %1377 = vmatprep.subr.mxu0 0.0
        %1378 = vmatpush1.msra.mxu0 0.0
        %1379 = vmatprep.subr.mxu0 0.0
        %1380 = vmatpush1.msra.mxu0 0.0
        %1381 = vmatprep.subr.mxu0 0.0
        %1382 = vmatpush1.msra.mxu0 0.0
        %1383 = vmatprep.subr.mxu0 0.0
        %1384 = vmatpush1.msra.mxu0 0.0
        %1385 = vmatprep.subr.mxu0 0.0
        %1386 = vmatpush1.msra.mxu0 0.0
        %1387 = vmatprep.subr.mxu0 0.0
        %1388 = vmatpush1.msra.mxu0 0.0
        %1389 = vmatprep.subr.mxu0 0.0
        %1390 = vmatpush1.msra.mxu0 0.0
        %1391 = vmatprep.subr.mxu0 0.0
        %1392 = vmatpush1.msra.mxu0 0.0
        %1393 = vmatprep.subr.mxu0 0.0
        %1394 = vmatpush1.msra.mxu0 0.0
        %1395 = vmatprep.subr.mxu0 0.0
        %1396 = vmatpush1.msra.mxu0 0.0
        %1397 = vmatprep.subr.mxu0 0.0
        %1398 = vmatpush1.msra.mxu0 0.0
        %1399 = vmatprep.subr.mxu0 0.0
        %1400 = vmatpush1.msra.mxu0 0.0
        %1401 = vmatprep.subr.mxu0 0.0
        %1402 = vmatpush1.msra.mxu0 0.0
        %1403 = vmatprep.subr.mxu0 0.0
        %1404 = vmatpush1.msra.mxu0 0.0
        %1405 = vmatprep.subr.mxu0 0.0
        %1406 = vmatpush1.msra.mxu0 0.0
        %1407 = vmatprep.subr.mxu0 0.0
        %1408 = vmatpush1.msra.mxu0 0.0
        %1409 = vmatprep.subr.mxu0 0.0
        %1410 = vmatpush1.msra.mxu0 0.0
        %1411 = vmatprep.subr.mxu0 0.0
        %1412 = vmatpush1.msra.mxu0 0.0
        %1413 = vmatprep.subr.mxu0 0.0
        %1414 = vmatpush1.msra.mxu0 0.0
        %1415 = vmatprep.subr.mxu0 0.0
        %1416 = vmatpush1.msra.mxu0 0.0
        %1417 = vmatprep.mubr.f32.mxu0 0.0
        %1418 = vmatmul.mubr.f32.gmra.mrb[0].mxu0 %v1351
        %v1419 = vpop.f32.mrb[0].mxu0
        %v1420 = vadd.f32 0.0, %v1419
        %v1421 = vpop.f32.mrb[0].mxu0
        %1422 = vdwg.mxu0
        %1423 = vrot.lane.b32.xlu0 %v845, 64
        %v1424 = vpop.permute.xlu0 %1423
        %v1427 = vsel %vm848, %v1194, 0
        %1429 = vmatprep.subr.mxu0 0.0
        %1430 = vmatpush1.msra.mxu0 %v1424
        %1431 = vmatprep.subr.mxu0 0.0
        %1432 = vmatpush1.msra.mxu0 0.0
        %1433 = vmatprep.subr.mxu0 0.0
        %1434 = vmatpush1.msra.mxu0 0.0
        %1435 = vmatprep.subr.mxu0 0.0
        %1436 = vmatpush1.msra.mxu0 0.0
        %1437 = vmatprep.subr.mxu0 0.0
        %1438 = vmatpush1.msra.mxu0 0.0
        %1439 = vmatprep.subr.mxu0 0.0
        %1440 = vmatpush1.msra.mxu0 0.0
        %1441 = vmatprep.subr.mxu0 0.0
        %1442 = vmatpush1.msra.mxu0 0.0
        %1443 = vmatprep.subr.mxu0 0.0
        %1444 = vmatpush1.msra.mxu0 0.0
        %1445 = vmatprep.subr.mxu0 0.0
        %1446 = vmatpush1.msra.mxu0 0.0
        %1447 = vmatprep.subr.mxu0 0.0
        %1448 = vmatpush1.msra.mxu0 0.0
        %1449 = vmatprep.subr.mxu0 0.0
        %1450 = vmatpush1.msra.mxu0 0.0
        %1451 = vmatprep.subr.mxu0 0.0
        %1452 = vmatpush1.msra.mxu0 0.0
        %1453 = vmatprep.subr.mxu0 0.0
        %1454 = vmatpush1.msra.mxu0 0.0
        %1455 = vmatprep.subr.mxu0 0.0
        %1456 = vmatpush1.msra.mxu0 0.0
        %1457 = vmatprep.subr.mxu0 0.0
        %1458 = vmatpush1.msra.mxu0 0.0
        %1459 = vmatprep.subr.mxu0 0.0
        %1460 = vmatpush1.msra.mxu0 0.0
        %1461 = vmatprep.subr.mxu0 0.0
        %1462 = vmatpush1.msra.mxu0 0.0
        %1463 = vmatprep.subr.mxu0 0.0
        %1464 = vmatpush1.msra.mxu0 0.0
        %1465 = vmatprep.subr.mxu0 0.0
        %1466 = vmatpush1.msra.mxu0 0.0
        %1467 = vmatprep.subr.mxu0 0.0
        %1468 = vmatpush1.msra.mxu0 0.0
        %1469 = vmatprep.subr.mxu0 0.0
        %1470 = vmatpush1.msra.mxu0 0.0
        %1471 = vmatprep.subr.mxu0 0.0
        %1472 = vmatpush1.msra.mxu0 0.0
        %1473 = vmatprep.subr.mxu0 0.0
        %1474 = vmatpush1.msra.mxu0 0.0
        %1475 = vmatprep.subr.mxu0 0.0
        %1476 = vmatpush1.msra.mxu0 0.0
        %1477 = vmatprep.subr.mxu0 0.0
        %1478 = vmatpush1.msra.mxu0 0.0
        %1479 = vmatprep.subr.mxu0 0.0
        %1480 = vmatpush1.msra.mxu0 0.0
        %1481 = vmatprep.subr.mxu0 0.0
        %1482 = vmatpush1.msra.mxu0 0.0
        %1483 = vmatprep.subr.mxu0 0.0
        %1484 = vmatpush1.msra.mxu0 0.0
        %1485 = vmatprep.subr.mxu0 0.0
        %1486 = vmatpush1.msra.mxu0 0.0
        %1487 = vmatprep.subr.mxu0 0.0
        %1488 = vmatpush1.msra.mxu0 0.0
        %1489 = vmatprep.subr.mxu0 0.0
        %1490 = vmatpush1.msra.mxu0 0.0
        %1491 = vmatprep.subr.mxu0 0.0
        %1492 = vmatpush1.msra.mxu0 0.0
        %1493 = vmatprep.mubr.f32.mxu0 0.0
        %1494 = vmatmul.mubr.f32.gmra.mrb[0].mxu0 %v1427
        %v1495 = vpop.f32.mrb[0].mxu0
        %v1496 = vadd.f32 0.0, %v1495
        %v1497 = vpop.f32.mrb[0].mxu0
        %1498 = vdwg.mxu0
        %1500 = vrot.lane.b32.xlu0 %v1344, 8
        %v1501 = vpop.permute.xlu0 %1500
        %1504 = vrot.lane.b32.xlu0 %v1420, 16
        %v1505 = vpop.permute.xlu0 %1504
        %1508 = vrot.lane.b32.xlu0 %v1496, 24
        %v1509 = vpop.permute.xlu0 %1508
        %v1511 = vsel %vm848, %v1268, %v1501
        %vm1512 = vcmask 130048
        %v1513 = vsel %vm1512, %v1511, %v1505
        %vm1514 = vcmask 195584
        %v1515 = vsel %vm1514, %v1513, %v1509
        %v1516 = vld [vmem:[%s681] sm:$0xff]
        %v1517 = vld [vmem:[%s681 + $0x8] sm:$0xff]
        %v1518 = vld [vmem:[%s681 + $0x10] sm:$0xff]
        %v1519 = vld [vmem:[%s681 + $0x18] sm:$0xff]
        %v1520 = vld [vmem:[%s684] sm:$0x1]
        %v1522 = vlaneseq
        %v1523 = vshrl.u32 %v1522, 7
        %v1524 = vsub.s32 0, %v1523
        %v1525 = vrot.slane %v1520, %v1524
        %v1528 = vsel %vm718, %v1515, 0
        %1530 = vmatprep.subr.mxu0 0.0
        %1531 = vmatpush1.msra.mxu0 %v1516
        %1532 = vmatprep.subr.mxu0 0.0
        %1533 = vmatpush1.msra.mxu0 %v1517
        %1534 = vmatprep.subr.mxu0 0.0
        %1535 = vmatpush1.msra.mxu0 %v1518
        %1536 = vmatprep.subr.mxu0 0.0
        %1537 = vmatpush1.msra.mxu0 %v1519
        %1538 = vmatprep.subr.mxu0 0.0
        %1539 = vmatpush1.msra.mxu0 0.0
        %1540 = vmatprep.subr.mxu0 0.0
        %1541 = vmatpush1.msra.mxu0 0.0
        %1542 = vmatprep.subr.mxu0 0.0
        %1543 = vmatpush1.msra.mxu0 0.0
        %1544 = vmatprep.subr.mxu0 0.0
        %1545 = vmatpush1.msra.mxu0 0.0
        %1546 = vmatprep.subr.mxu0 0.0
        %1547 = vmatpush1.msra.mxu0 0.0
        %1548 = vmatprep.subr.mxu0 0.0
        %1549 = vmatpush1.msra.mxu0 0.0
        %1550 = vmatprep.subr.mxu0 0.0
        %1551 = vmatpush1.msra.mxu0 0.0
        %1552 = vmatprep.subr.mxu0 0.0
        %1553 = vmatpush1.msra.mxu0 0.0
        %1554 = vmatprep.subr.mxu0 0.0
        %1555 = vmatpush1.msra.mxu0 0.0
        %1556 = vmatprep.subr.mxu0 0.0
        %1557 = vmatpush1.msra.mxu0 0.0
        %1558 = vmatprep.subr.mxu0 0.0
        %1559 = vmatpush1.msra.mxu0 0.0
        %1560 = vmatprep.subr.mxu0 0.0
        %1561 = vmatpush1.msra.mxu0 0.0
        %1562 = vmatprep.subr.mxu0 0.0
        %1563 = vmatpush1.msra.mxu0 0.0
        %1564 = vmatprep.subr.mxu0 0.0
        %1565 = vmatpush1.msra.mxu0 0.0
        %1566 = vmatprep.subr.mxu0 0.0
        %1567 = vmatpush1.msra.mxu0 0.0
        %1568 = vmatprep.subr.mxu0 0.0
        %1569 = vmatpush1.msra.mxu0 0.0
        %1570 = vmatprep.subr.mxu0 0.0
        %1571 = vmatpush1.msra.mxu0 0.0
        %1572 = vmatprep.subr.mxu0 0.0
        %1573 = vmatpush1.msra.mxu0 0.0
        %1574 = vmatprep.subr.mxu0 0.0
        %1575 = vmatpush1.msra.mxu0 0.0
        %1576 = vmatprep.subr.mxu0 0.0
        %1577 = vmatpush1.msra.mxu0 0.0
        %1578 = vmatprep.subr.mxu0 0.0
        %1579 = vmatpush1.msra.mxu0 0.0
        %1580 = vmatprep.subr.mxu0 0.0
        %1581 = vmatpush1.msra.mxu0 0.0
        %1582 = vmatprep.subr.mxu0 0.0
        %1583 = vmatpush1.msra.mxu0 0.0
        %1584 = vmatprep.subr.mxu0 0.0
        %1585 = vmatpush1.msra.mxu0 0.0
        %1586 = vmatprep.subr.mxu0 0.0
        %1587 = vmatpush1.msra.mxu0 0.0
        %1588 = vmatprep.subr.mxu0 0.0
        %1589 = vmatpush1.msra.mxu0 0.0
        %1590 = vmatprep.subr.mxu0 0.0
        %1591 = vmatpush1.msra.mxu0 0.0
        %1592 = vmatprep.subr.mxu0 0.0
        %1593 = vmatpush1.msra.mxu0 0.0
        %1594 = vmatprep.mubr.f32.mxu0 0.0
        %1595 = vmatmul.mubr.f32.gmra.mrb[0].mxu0 %v1528
        %v1596 = vpop.f32.mrb[0].mxu0
        %v1597 = vadd.f32 %v1525, %v1596
        %v1598 = vpop.f32.mrb[0].mxu0
        %1599 = vdwg.mxu0
        %v1600 = vadd.f32 %v714, %v1597
        %v1601 = vld [vmem:[%s687] sm:$0x1]
        %v1602 = vld [vmem:[%s690] sm:$0x1]
        %v1603 = vsel %vm718, %v1600, 0.0
        %1604 = vadd.xlane.f32.xlu0 %v1603
        %v1605 = vpop.xlane.xlu0 %1604
        %v1606 = vmul.f32 %v1605, %v722
        %v1607 = vsub.f32 %v1600, %v1606
        %v1608 = vmul.f32 %v1607, %v1607
        %v1609 = vsel %vm718, %v1608, 0.0
        %1610 = vadd.xlane.f32.xlu0 %v1609
        %v1611 = vpop.xlane.xlu0 %1610
        %v1612 = vmul.f32 %v1611, %v722
        %v1613 = vadd.f32 %v1612, 1e-05
        %v1614 = vrsqrt.pop %v1613
        %v1615 = vmul.f32 %v1613, %v1614
        %vm1616 = vcmp.eq.f32.partialorder %v1613, inf
        %v1617 = vsel %vm1616, %v1613, %v1615
        %vm1618 = vcmp.eq.f32.partialorder %v1613, 0.0
        %v1619 = vand.u32 %v1613, 2147483648
        %v1620 = vsel %vm1618, %v1619, %v1617
        %v1621 = vrcp.pop %v1620
        %v1622 = vmul.f32 %v1607, %v1621
        %v1624 = vlaneseq
        %v1625 = vshrl.u32 %v1624, 7
        %v1626 = vsub.s32 0, %v1625
        %v1627 = vrot.slane %v1601, %v1626
        %v1629 = vmul.f32 %v1627, %v1622
        %v1631 = vlaneseq
        %v1632 = vshrl.u32 %v1631, 7
        %v1633 = vsub.s32 0, %v1632
        %v1634 = vrot.slane %v1602, %v1633
        %v1636 = vadd.f32 %v1629, %v1634
        %v1637 = vld [vmem:[%s695] sm:$0xff]
        %v1638 = vld [vmem:[%s695 + $0x8] sm:$0xff]
        %v1639 = vld [vmem:[%s695 + $0x10] sm:$0xff]
        %v1640 = vld [vmem:[%s695 + $0x18] sm:$0xff]
        %v1641 = vld [vmem:[%s698] sm:$0x1]
        %v1643 = vlaneseq
        %v1644 = vshrl.u32 %v1643, 7
        %v1645 = vsub.s32 0, %v1644
        %v1646 = vrot.slane %v1641, %v1645
        %v1649 = vsel %vm718, %v1636, 0
        %1651 = vmatprep.subr.mxu0 0.0
        %1652 = vmatpush1.msra.mxu0 %v1637
        %1653 = vmatprep.subr.mxu0 0.0
        %1654 = vmatpush1.msra.mxu0 %v1638
        %1655 = vmatprep.subr.mxu0 0.0
        %1656 = vmatpush1.msra.mxu0 %v1639
        %1657 = vmatprep.subr.mxu0 0.0
        %1658 = vmatpush1.msra.mxu0 %v1640
        %1659 = vmatprep.subr.mxu0 0.0
        %1660 = vmatpush1.msra.mxu0 0.0
        %1661 = vmatprep.subr.mxu0 0.0
        %1662 = vmatpush1.msra.mxu0 0.0
        %1663 = vmatprep.subr.mxu0 0.0
        %1664 = vmatpush1.msra.mxu0 0.0
        %1665 = vmatprep.subr.mxu0 0.0
        %1666 = vmatpush1.msra.mxu0 0.0
        %1667 = vmatprep.subr.mxu0 0.0
        %1668 = vmatpush1.msra.mxu0 0.0
        %1669 = vmatprep.subr.mxu0 0.0
        %1670 = vmatpush1.msra.mxu0 0.0
        %1671 = vmatprep.subr.mxu0 0.0
        %1672 = vmatpush1.msra.mxu0 0.0
        %1673 = vmatprep.subr.mxu0 0.0
        %1674 = vmatpush1.msra.mxu0 0.0
        %1675 = vmatprep.subr.mxu0 0.0
        %1676 = vmatpush1.msra.mxu0 0.0
        %1677 = vmatprep.subr.mxu0 0.0
        %1678 = vmatpush1.msra.mxu0 0.0
        %1679 = vmatprep.subr.mxu0 0.0
        %1680 = vmatpush1.msra.mxu0 0.0
        %1681 = vmatprep.subr.mxu0 0.0
        %1682 = vmatpush1.msra.mxu0 0.0
        %1683 = vmatprep.subr.mxu0 0.0
        %1684 = vmatpush1.msra.mxu0 0.0
        %1685 = vmatprep.subr.mxu0 0.0
        %1686 = vmatpush1.msra.mxu0 0.0
        %1687 = vmatprep.subr.mxu0 0.0
        %1688 = vmatpush1.msra.mxu0 0.0
        %1689 = vmatprep.subr.mxu0 0.0
        %1690 = vmatpush1.msra.mxu0 0.0
        %1691 = vmatprep.subr.mxu0 0.0
        %1692 = vmatpush1.msra.mxu0 0.0
        %1693 = vmatprep.subr.mxu0 0.0
        %1694 = vmatpush1.msra.mxu0 0.0
        %1695 = vmatprep.subr.mxu0 0.0
        %1696 = vmatpush1.msra.mxu0 0.0
        %1697 = vmatprep.subr.mxu0 0.0
        %1698 = vmatpush1.msra.mxu0 0.0
        %1699 = vmatprep.subr.mxu0 0.0
        %1700 = vmatpush1.msra.mxu0 0.0
        %1701 = vmatprep.subr.mxu0 0.0
        %1702 = vmatpush1.msra.mxu0 0.0
        %1703 = vmatprep.subr.mxu0 0.0
        %1704 = vmatpush1.msra.mxu0 0.0
        %1705 = vmatprep.subr.mxu0 0.0
        %1706 = vmatpush1.msra.mxu0 0.0
        %1707 = vmatprep.subr.mxu0 0.0
        %1708 = vmatpush1.msra.mxu0 0.0
        %1709 = vmatprep.subr.mxu0 0.0
        %1710 = vmatpush1.msra.mxu0 0.0
        %1711 = vmatprep.subr.mxu0 0.0
        %1712 = vmatpush1.msra.mxu0 0.0
        %1713 = vmatprep.subr.mxu0 0.0
        %1714 = vmatpush1.msra.mxu0 0.0
        %1715 = vmatprep.mubr.f32.mxu0 0.0
        %1716 = vmatmul.mubr.f32.gmra.mrb[0].mxu0 %v1649
        %v1717 = vpop.f32.mrb[0].mxu0
        %v1718 = vadd.f32 %v1646, %v1717
        %v1719 = vpop.f32.mrb[0].mxu0
        %1720 = vdwg.mxu0
        %v1721 = vmul.f32 %v1718, 0.5
        %v1722 = vmul.f32 %v1718, 0.044715
        %v1723 = vmul.f32 %v1722, %v1718
        %v1724 = vmul.f32 %v1723, %v1718
        %v1725 = vadd.f32 %v1718, %v1724
        %v1726 = vmul.f32 %v1725, 0.7978846
        %v1727 = vtanh.pop %v1726
        %v1728 = vadd.f32 %v1727, 1.0
        %v1729 = vmul.f32 %v1721, %v1728
        %v1730 = vld [vmem:[%s703] sm:$0xff]
        %v1731 = vld [vmem:[%s703 + $0x8] sm:$0xff]
        %v1732 = vld [vmem:[%s703 + $0x10] sm:$0xff]
        %v1733 = vld [vmem:[%s703 + $0x18] sm:$0xff]
        %v1734 = vld [vmem:[%s703 + $0x20] sm:$0xff]
        %v1735 = vld [vmem:[%s703 + $0x28] sm:$0xff]
        %v1736 = vld [vmem:[%s703 + $0x30] sm:$0xff]
        %v1737 = vld [vmem:[%s703 + $0x38] sm:$0xff]
        %v1738 = vld [vmem:[%s703 + $0x40] sm:$0xff]
        %v1739 = vld [vmem:[%s703 + $0x48] sm:$0xff]
        %v1740 = vld [vmem:[%s703 + $0x50] sm:$0xff]
        %v1741 = vld [vmem:[%s703 + $0x58] sm:$0xff]
        %v1742 = vld [vmem:[%s703 + $0x60] sm:$0xff]
        %v1743 = vld [vmem:[%s703 + $0x68] sm:$0xff]
        %v1744 = vld [vmem:[%s703 + $0x70] sm:$0xff]
        %v1745 = vld [vmem:[%s703 + $0x78] sm:$0xff]
        %v1746 = vld [vmem:[%s706] sm:$0x1]
        %v1748 = vlaneseq
        %v1749 = vshrl.u32 %v1748, 7
        %v1750 = vsub.s32 0, %v1749
        %v1751 = vrot.slane %v1746, %v1750
        %1753 = vmatprep.subr.mxu0 0.0
        %1754 = vmatpush1.msra.mxu0 %v1730
        %1755 = vmatprep.subr.mxu0 0.0
        %1756 = vmatpush1.msra.mxu0 %v1731
        %1757 = vmatprep.subr.mxu0 0.0
        %1758 = vmatpush1.msra.mxu0 %v1732
        %1759 = vmatprep.subr.mxu0 0.0
        %1760 = vmatpush1.msra.mxu0 %v1733
        %1761 = vmatprep.subr.mxu0 0.0
        %1762 = vmatpush1.msra.mxu0 %v1734
        %1763 = vmatprep.subr.mxu0 0.0
        %1764 = vmatpush1.msra.mxu0 %v1735
        %1765 = vmatprep.subr.mxu0 0.0
        %1766 = vmatpush1.msra.mxu0 %v1736
        %1767 = vmatprep.subr.mxu0 0.0
        %1768 = vmatpush1.msra.mxu0 %v1737
        %1769 = vmatprep.subr.mxu0 0.0
        %1770 = vmatpush1.msra.mxu0 %v1738
        %1771 = vmatprep.subr.mxu0 0.0
        %1772 = vmatpush1.msra.mxu0 %v1739
        %1773 = vmatprep.subr.mxu0 0.0
        %1774 = vmatpush1.msra.mxu0 %v1740
        %1775 = vmatprep.subr.mxu0 0.0
        %1776 = vmatpush1.msra.mxu0 %v1741
        %1777 = vmatprep.subr.mxu0 0.0
        %1778 = vmatpush1.msra.mxu0 %v1742
        %1779 = vmatprep.subr.mxu0 0.0
        %1780 = vmatpush1.msra.mxu0 %v1743
        %1781 = vmatprep.subr.mxu0 0.0
        %1782 = vmatpush1.msra.mxu0 %v1744
        %1783 = vmatprep.subr.mxu0 0.0
        %1784 = vmatpush1.msra.mxu0 %v1745
        %1785 = vmatprep.subr.mxu0 0.0
        %1786 = vmatpush1.msra.mxu0 0.0
        %1787 = vmatprep.subr.mxu0 0.0
        %1788 = vmatpush1.msra.mxu0 0.0
        %1789 = vmatprep.subr.mxu0 0.0
        %1790 = vmatpush1.msra.mxu0 0.0
        %1791 = vmatprep.subr.mxu0 0.0
        %1792 = vmatpush1.msra.mxu0 0.0
        %1793 = vmatprep.subr.mxu0 0.0
        %1794 = vmatpush1.msra.mxu0 0.0
        %1795 = vmatprep.subr.mxu0 0.0
        %1796 = vmatpush1.msra.mxu0 0.0
        %1797 = vmatprep.subr.mxu0 0.0
        %1798 = vmatpush1.msra.mxu0 0.0
        %1799 = vmatprep.subr.mxu0 0.0
        %1800 = vmatpush1.msra.mxu0 0.0
        %1801 = vmatprep.subr.mxu0 0.0
        %1802 = vmatpush1.msra.mxu0 0.0
        %1803 = vmatprep.subr.mxu0 0.0
        %1804 = vmatpush1.msra.mxu0 0.0
        %1805 = vmatprep.subr.mxu0 0.0
        %1806 = vmatpush1.msra.mxu0 0.0
        %1807 = vmatprep.subr.mxu0 0.0
        %1808 = vmatpush1.msra.mxu0 0.0
        %1809 = vmatprep.subr.mxu0 0.0
        %1810 = vmatpush1.msra.mxu0 0.0
        %1811 = vmatprep.subr.mxu0 0.0
        %1812 = vmatpush1.msra.mxu0 0.0
        %1813 = vmatprep.subr.mxu0 0.0
        %1814 = vmatpush1.msra.mxu0 0.0
        %1815 = vmatprep.subr.mxu0 0.0
        %1816 = vmatpush1.msra.mxu0 0.0
        %1817 = vmatprep.mubr.f32.mxu0 0.0
        %1818 = vmatmul.mubr.f32.gmra.mrb[0].mxu0 %v1729
        %v1819 = vpop.f32.mrb[0].mxu0
        %v1820 = vadd.f32 %v1751, %v1819
        %v1821 = vpop.f32.mrb[0].mxu0
        %1822 = vdwg.mxu0
        %v1823 = vadd.f32 %v1600, %v1820
        %1824 = vst.msk [vmem:[#allocation2] sm:$0xff] %vm718, %v1823
        %p1825 = scmp.eq.s32.totalorder %s35, 1
        // Predicated region
        $region89: #{tpu_custom_call.1} parent=83 // pred_check
          %p1826 = pneg %p1825
        $region90: #{tpu_custom_call.1} parent=83 // pred_check_branch
          %1828 = sbr.rel (%p1826) target = $region92
        $region91: #{tpu_custom_call.1} parent=83 // pred_region
          %v1829 = vld [vmem:[%s13] sm:$0x1]
          %v1830 = vld [vmem:[%s14] sm:$0x1]
          %v1831 = vsel %vm718, %v1823, 0.0
          %1832 = vadd.xlane.f32.xlu0 %v1831
          %v1833 = vpop.xlane.xlu0 %1832
          %v1834 = vmul.f32 %v1833, %v722
          %v1835 = vsub.f32 %v1823, %v1834
          %v1836 = vmul.f32 %v1835, %v1835
          %v1837 = vsel %vm718, %v1836, 0.0
          %1838 = vadd.xlane.f32.xlu0 %v1837
          %v1839 = vpop.xlane.xlu0 %1838
          %v1840 = vmul.f32 %v1839, %v722
          %v1841 = vadd.f32 %v1840, 1e-05
          %v1842 = vrsqrt.pop %v1841
          %v1843 = vmul.f32 %v1841, %v1842
          %vm1844 = vcmp.eq.f32.partialorder %v1841, inf
          %v1845 = vsel %vm1844, %v1841, %v1843
          %vm1846 = vcmp.eq.f32.partialorder %v1841, 0.0
          %v1847 = vand.u32 %v1841, 2147483648
          %v1848 = vsel %vm1846, %v1847, %v1845
          %v1849 = vrcp.pop %v1848
          %v1850 = vmul.f32 %v1835, %v1849
          %v1852 = vlaneseq
          %v1853 = vshrl.u32 %v1852, 7
          %v1854 = vsub.s32 0, %v1853
          %v1855 = vrot.slane %v1829, %v1854
          %v1857 = vmul.f32 %v1855, %v1850
          %v1859 = vlaneseq
          %v1860 = vshrl.u32 %v1859, 7
          %v1861 = vsub.s32 0, %v1860
          %v1862 = vrot.slane %v1830, %v1861
          %v1864 = vadd.f32 %v1857, %v1862
          %v1865 = vld [vmem:[%s15] sm:$0xff]
          %v1866 = vld [vmem:[%s15 + $0x8] sm:$0xff]
          %v1867 = vld [vmem:[%s15 + $0x10] sm:$0xff]
          %v1868 = vld [vmem:[%s15 + $0x18] sm:$0xff]
          %v1869 = vld [vmem:[%s15 + $0x20] sm:$0xff]
          %v1870 = vld [vmem:[%s15 + $0x28] sm:$0xff]
          %v1871 = vld [vmem:[%s15 + $0x30] sm:$0xff]
          %v1872 = vld [vmem:[%s15 + $0x38] sm:$0xff]
          %v1874 = vsel %vm718, %v1864, 0
          %1876 = vmatprep.subr.mxu0 %v1866
          %1877 = vmatpush1.msra.mxu0 %v1865
          %1878 = vmatprep.subr.mxu0 %v1868
          %1879 = vmatpush1.msra.mxu0 %v1867
          %1880 = vmatprep.subr.mxu0 %v1870
          %1881 = vmatpush1.msra.mxu0 %v1869
          %1882 = vmatprep.subr.mxu0 %v1872
          %1883 = vmatpush1.msra.mxu0 %v1871
          %1884 = vmatprep.subr.mxu0 0.0
          %1885 = vmatpush1.msra.mxu0 0.0
          %1886 = vmatprep.subr.mxu0 0.0
          %1887 = vmatpush1.msra.mxu0 0.0
          %1888 = vmatprep.subr.mxu0 0.0
          %1889 = vmatpush1.msra.mxu0 0.0
          %1890 = vmatprep.subr.mxu0 0.0
          %1891 = vmatpush1.msra.mxu0 0.0
          %1892 = vmatprep.subr.mxu0 0.0
          %1893 = vmatpush1.msra.mxu0 0.0
          %1894 = vmatprep.subr.mxu0 0.0
          %1895 = vmatpush1.msra.mxu0 0.0
          %1896 = vmatprep.subr.mxu0 0.0
          %1897 = vmatpush1.msra.mxu0 0.0
          %1898 = vmatprep.subr.mxu0 0.0
          %1899 = vmatpush1.msra.mxu0 0.0
          %1900 = vmatprep.subr.mxu0 0.0
          %1901 = vmatpush1.msra.mxu0 0.0
          %1902 = vmatprep.subr.mxu0 0.0
          %1903 = vmatpush1.msra.mxu0 0.0
          %1904 = vmatprep.subr.mxu0 0.0
          %1905 = vmatpush1.msra.mxu0 0.0
          %1906 = vmatprep.subr.mxu0 0.0
          %1907 = vmatpush1.msra.mxu0 0.0
          %1908 = vmatprep.subr.mxu0 0.0
          %1909 = vmatpush1.msra.mxu0 0.0
          %1910 = vmatprep.subr.mxu0 0.0
          %1911 = vmatpush1.msra.mxu0 0.0
          %1912 = vmatprep.subr.mxu0 0.0
          %1913 = vmatpush1.msra.mxu0 0.0
          %1914 = vmatprep.subr.mxu0 0.0
          %1915 = vmatpush1.msra.mxu0 0.0
          %1916 = vmatprep.subr.mxu0 0.0
          %1917 = vmatpush1.msra.mxu0 0.0
          %1918 = vmatprep.subr.mxu0 0.0
          %1919 = vmatpush1.msra.mxu0 0.0
          %1920 = vmatprep.subr.mxu0 0.0
          %1921 = vmatpush1.msra.mxu0 0.0
          %1922 = vmatprep.subr.mxu0 0.0
          %1923 = vmatpush1.msra.mxu0 0.0
          %1924 = vmatprep.subr.mxu0 0.0
          %1925 = vmatpush1.msra.mxu0 0.0
          %1926 = vmatprep.subr.mxu0 0.0
          %1927 = vmatpush1.msra.mxu0 0.0
          %1928 = vmatprep.subr.mxu0 0.0
          %1929 = vmatpush1.msra.mxu0 0.0
          %1930 = vmatprep.subr.mxu0 0.0
          %1931 = vmatpush1.msra.mxu0 0.0
          %1932 = vmatprep.subr.mxu0 0.0
          %1933 = vmatpush1.msra.mxu0 0.0
          %1934 = vmatprep.subr.mxu0 0.0
          %1935 = vmatpush1.msra.mxu0 0.0
          %1936 = vmatprep.subr.mxu0 0.0
          %1937 = vmatpush1.msra.mxu0 0.0
          %1938 = vmatprep.subr.mxu0 0.0
          %1939 = vmatpush1.msra.mxu0 0.0
          %1940 = vmatprep.mubr.f32.mxu0 0.0
          %1941 = vmatmul.mubr.f32.gmra.mrb[0].mxu0 %v1874
          %v1942 = vpop.f32.mrb[0].mxu0
          %v1943 = vadd.f32 0.0, %v1942
          %v1944 = vpop.f32.mrb[0].mxu0
          %v1945 = vadd.f32 0.0, %v1944
          %1946 = vdwg.mxu0
          %1947 = vst [vmem:[%s661] sm:$0xff] %v1943
          %1948 = vst [vmem:[%s661 + $0x8] sm:$0xff] %v1945
        $region92: #{tpu_custom_call.1} parent=83 // pred_fallthru
          _
        %s1949 = sand.u32 %s446, 1
        %s1950 = scalar_lea.sflag [#allocation4], %s1949
        %s1951 = sand.u32 %s446, 1
        %s1952 = smul.addr %s1951, 16
        %s1953 = scalar_lea.vmem [#allocation3], %s1952
        // Predicated region
        $region93: #{tpu_custom_call.1} parent=83 // pred_check
          %p1954 = pneg %p456
        $region94: #{tpu_custom_call.1} parent=83 // pred_check_branch
          %1956 = sbr.rel (%p1954) target = $region96
        $region95: #{tpu_custom_call.1} parent=83 // pred_region
          %s1958 = ssub.s32 256, 256
          %1959 = vsyncadd %s1950, %s1958
          %s1960 = smul.addr %s34, 2
          %s1961 = smul.addr %s1960, 128
          %s1962 = scalar_lea.hbm %s16, %s1961
          %s1964 = sshll.u32 %s1953, 4
          %s1965 = int_to_ptr.vmem [resolvable:$true] %s1964
          %1967 = dma.vmem_to_hbm [thread:$0]  %s1965, 256, %s1962, %s1950
        $region96: #{tpu_custom_call.1} parent=83 // pred_fallthru
          _
      $region84: #{tpu_custom_call.1} parent=5 // pred_fallthru
        _
      %p1968 = scmp.le.s32.totalorder 2, %s25
      // Predicated region
      $region97: #{tpu_custom_call.1} parent=5 // pred_check
        %p1969 = pneg %p1968
      $region98: #{tpu_custom_call.1} parent=5 // pred_check_branch
        %1971 = sbr.rel (%p1969) target = $region100
      $region99: #{tpu_custom_call.1} parent=5 // pred_region
        %s1972 = ssub.s32 %s25, 2
        // Predicated region
        $region101: #{tpu_custom_call.1} parent=99 // pred_check
          %p1973 = pneg %p462
        $region102: #{tpu_custom_call.1} parent=99 // pred_check_branch
          %1975 = sbr.rel (%p1973) target = $region104
        $region103: #{tpu_custom_call.1} parent=99 // pred_region
          %s1976 = sand.u32 %s447, 1
          %s1977 = scalar_lea.sflag [#allocation4], %s1976
          %s1978 = sand.u32 %s447, 1
          %s1979 = smul.addr %s1978, 16
          %s1980 = scalar_lea.vmem [#allocation3], %s1979
          %1981 = dma.done %s1977, 256
        $region104: #{tpu_custom_call.1} parent=99 // pred_fallthru
          _
      $region100: #{tpu_custom_call.1} parent=5 // pred_fallthru
        _
    $region6: #{tpu_custom_call.1} parent=1 // loop_footer
      %s29 = sadd.s32 1, %s25
    $region7: #{tpu_custom_call.1} parent=1 // loop_footer_branch
      %24 = sbr.rel target = $region3
    $region8: #{tpu_custom_call.1} parent=1 // loop_exit
      _
    %1982 = vsyncpa [#allocation4], 1
    %s1983 = scalar_lea.sflag [#allocation4], 1
    %1984 = vsyncpa %s1983, 1

</llo_original>
